<compile_context>
chip_gen: v5e
topology: v5e:2x2
jax: 0.10.0
libtpu: 0.0.40
codegen_flags: <defaults>
</compile_context>

<pallas_src>
import functools
import math

import jax
import jax.numpy as jnp
from jax.experimental import pallas as pl
from jax.experimental.pallas import tpu as pltpu

# ----------------------------- tiny BERT config ------------------------------
VOCAB_SIZE = 100
HIDDEN = 32
NUM_LAYERS = 2
NUM_HEADS = 2
HEAD_DIM = HIDDEN // NUM_HEADS          # 16
INTERMEDIATE = 64
MAX_POS = 16
TYPE_VOCAB = 2
LN_EPS = 1e-12
BATCH = 2
SEQ = 8


# ------------------------------ helper (in-kernel) ---------------------------
def _layernorm(x, gamma, beta):
    mean = jnp.mean(x, axis=-1, keepdims=True)
    var = jnp.mean(jnp.square(x - mean), axis=-1, keepdims=True)
    inv = jax.lax.rsqrt(var + LN_EPS)
    return (x - mean) * inv * gamma + beta


# ------------------------------ Pallas kernels -------------------------------
def _embedding_ln_kernel(x_ref, g_ref, b_ref, o_ref):
    """LayerNorm-only (no zeros residual) for the embedding output."""
    o_ref[...] = _layernorm(x_ref[...], g_ref[...], b_ref[...]).astype(o_ref.dtype)


def embedding_layernorm(x, gamma, beta):
    M, H = x.shape
    return pl.pallas_call(
        _embedding_ln_kernel,
        out_shape=jax.ShapeDtypeStruct((M, H), x.dtype),
    )(x, gamma.reshape(1, H), beta.reshape(1, H))


def _pooler_kernel(x_ref, w_ref, b_ref, o_ref):
    y = jnp.dot(x_ref[...], w_ref[...], preferred_element_type=jnp.float32)
    o_ref[...] = jnp.tanh(y + b_ref[...]).astype(o_ref.dtype)


def pooler(cls_tokens, w, b):
    B, H = cls_tokens.shape
    return pl.pallas_call(
        _pooler_kernel,
        out_shape=jax.ShapeDtypeStruct((B, H), cls_tokens.dtype),
    )(cls_tokens, w, b.reshape(1, H))


def _encoder_layer_kernel(h0_ref, mask_ref,
                          qkv_w_ref, qkv_b_ref, ao_w_ref, ao_b_ref,
                          ln1_g_ref, ln1_b_ref,
                          inter_w_ref, inter_b_ref, out_w_ref, out_b_ref,
                          ln2_g_ref, ln2_b_ref,
                          o_ref, h_scratch,
                          *, batch, seq, num_heads, head_dim):
    """One full transformer encoder layer per grid step; hidden carried in VMEM."""
    @pl.when(pl.program_id(0) == 0)
    def _():
        h_scratch[...] = h0_ref[...]

    h = h_scratch[...]                                   # (B*S, H) f32
    hidden = num_heads * head_dim
    scale = 1.0 / math.sqrt(head_dim)

    # ---- fused Q/K/V projection: one (H, 3H) matmul ----
    qkv = jnp.dot(h, qkv_w_ref[0], preferred_element_type=jnp.float32) + qkv_b_ref[0]
    q = qkv[:, 0:hidden]
    k = qkv[:, hidden:2 * hidden]
    v = qkv[:, 2 * hidden:3 * hidden]

    mask = mask_ref[...]                                 # (B, S) additive bias

    # ---- self-attention, statically unrolled over (batch, head) (tiny) ----
    ctx_rows = []
    for b in range(batch):
        r0 = b * seq
        bias = mask[b:b + 1, :]                          # (1, S)
        head_outs = []
        for hd in range(num_heads):
            c0 = hd * head_dim
            qb = q[r0:r0 + seq, c0:c0 + head_dim]        # (S, D)
            kb = k[r0:r0 + seq, c0:c0 + head_dim]
            vb = v[r0:r0 + seq, c0:c0 + head_dim]
            s = jax.lax.dot_general(qb, kb, (((1,), (1,)), ((), ())),
                                    preferred_element_type=jnp.float32)
            s = s * scale + bias
            s = s - jnp.max(s, axis=-1, keepdims=True)
            p = jnp.exp(s)
            p = p * pl.reciprocal(jnp.sum(p, axis=-1, keepdims=True), approx=True)
            head_outs.append(jnp.dot(p, vb, preferred_element_type=jnp.float32))
        ctx_rows.append(jnp.concatenate(head_outs, axis=1))   # (S, H)
    ctx = jnp.concatenate(ctx_rows, axis=0)                   # (B*S, H)

    # ---- attention output projection + residual + LayerNorm (fused) ----
    attn_out = jnp.dot(ctx, ao_w_ref[0], preferred_element_type=jnp.float32) + ao_b_ref[0]
    h = _layernorm(attn_out + h, ln1_g_ref[0], ln1_b_ref[0])

    # ---- feed-forward: matmul + bias + GELU + matmul + residual + LN (fused) ----
    inter = jnp.dot(h, inter_w_ref[0], preferred_element_type=jnp.float32) + inter_b_ref[0]
    # TODO(synk): transformers BERT uses exact erf-GELU; tanh-approx GELU is
    # used here for robust Mosaic lowering (diff < 1e-3 at these scales).
    inter = jax.nn.gelu(inter, approximate=True)
    ff = jnp.dot(inter, out_w_ref[0], preferred_element_type=jnp.float32) + out_b_ref[0]
    h = _layernorm(ff + h, ln2_g_ref[0], ln2_b_ref[0])

    h_scratch[...] = h
    o_ref[0] = h.astype(o_ref.dtype)


def encoder(hidden0, mask_bias, lp, *, batch, seq):
    """hidden0: (B*S, H); mask_bias: (B, S); lp: dict of (L, ...) stacked weights."""
    M, H = hidden0.shape
    L = lp["qkv_w"].shape[0]
    I = lp["inter_w"].shape[-1]

    grid_spec = pltpu.PrefetchScalarGridSpec(
        num_scalar_prefetch=0,
        grid=(L,),
        in_specs=[
            pl.BlockSpec((M, H), lambda l: (0, 0)),             # hidden0 (layer 0 init)
            pl.BlockSpec((batch, seq), lambda l: (0, 0)),       # attention mask bias
            pl.BlockSpec((1, H, 3 * H), lambda l: (l, 0, 0)),   # qkv_w
            pl.BlockSpec((1, 1, 3 * H), lambda l: (l, 0, 0)),   # qkv_b
            pl.BlockSpec((1, H, H), lambda l: (l, 0, 0)),       # ao_w
            pl.BlockSpec((1, 1, H), lambda l: (l, 0, 0)),       # ao_b
            pl.BlockSpec((1, 1, H), lambda l: (l, 0, 0)),       # ln1_g
            pl.BlockSpec((1, 1, H), lambda l: (l, 0, 0)),       # ln1_b
            pl.BlockSpec((1, H, I), lambda l: (l, 0, 0)),       # inter_w
            pl.BlockSpec((1, 1, I), lambda l: (l, 0, 0)),       # inter_b
            pl.BlockSpec((1, I, H), lambda l: (l, 0, 0)),       # out_w
            pl.BlockSpec((1, 1, H), lambda l: (l, 0, 0)),       # out_b
            pl.BlockSpec((1, 1, H), lambda l: (l, 0, 0)),       # ln2_g
            pl.BlockSpec((1, 1, H), lambda l: (l, 0, 0)),       # ln2_b
        ],
        out_specs=pl.BlockSpec((1, M, H), lambda l: (l, 0, 0)),
        scratch_shapes=[pltpu.VMEM((M, H), jnp.float32)],       # resident hidden state
    )
    return pl.pallas_call(
        functools.partial(_encoder_layer_kernel, batch=batch, seq=seq,
                          num_heads=NUM_HEADS, head_dim=HEAD_DIM),
        out_shape=jax.ShapeDtypeStruct((L, M, H), hidden0.dtype),
        grid_spec=grid_spec,
        compiler_params=pltpu.CompilerParams(
            dimension_semantics=("arbitrary",)),                # layer carry is sequential
    )(hidden0, mask_bias,
      lp["qkv_w"], lp["qkv_b"], lp["ao_w"], lp["ao_b"],
      lp["ln1_g"], lp["ln1_b"],
      lp["inter_w"], lp["inter_b"], lp["out_w"], lp["out_b"],
      lp["ln2_g"], lp["ln2_b"])


# ----------------------------- parameter creation ----------------------------
def init_params(key):
    """Deterministic synthetic BERT weights (std=0.02, zero biases, LN=1/0).
    Per-layer weights are pre-stacked along a leading layer axis and the
    Q/K/V projections are pre-concatenated into one (H, 3H) weight."""
    kcount = 0

    def nxt():
        nonlocal kcount
        kcount += 1
        return jax.random.fold_in(key, kcount)

    def w(shape):
        return (0.02 * jax.random.normal(nxt(), shape)).astype(jnp.float32)

    L = NUM_LAYERS
    params = {
        "word_emb": w((VOCAB_SIZE, HIDDEN)),
        "pos_emb": w((MAX_POS, HIDDEN)),
        "type_emb": w((TYPE_VOCAB, HIDDEN)),
        "emb_ln_g": jnp.ones((HIDDEN,), jnp.float32),
        "emb_ln_b": jnp.zeros((HIDDEN,), jnp.float32),
        "pool_w": w((HIDDEN, HIDDEN)),
        "pool_b": jnp.zeros((HIDDEN,), jnp.float32),
        "layers": {
            "qkv_w": w((L, HIDDEN, 3 * HIDDEN)),
            "qkv_b": jnp.zeros((L, 1, 3 * HIDDEN), jnp.float32),
            "ao_w": w((L, HIDDEN, HIDDEN)),
            "ao_b": jnp.zeros((L, 1, HIDDEN), jnp.float32),
            "ln1_g": jnp.ones((L, 1, HIDDEN), jnp.float32),
            "ln1_b": jnp.zeros((L, 1, HIDDEN), jnp.float32),
            "inter_w": w((L, HIDDEN, INTERMEDIATE)),
            "inter_b": jnp.zeros((L, 1, INTERMEDIATE), jnp.float32),
            "out_w": w((L, INTERMEDIATE, HIDDEN)),
            "out_b": jnp.zeros((L, 1, HIDDEN), jnp.float32),
            "ln2_g": jnp.ones((L, 1, HIDDEN), jnp.float32),
            "ln2_b": jnp.zeros((L, 1, HIDDEN), jnp.float32),
        },
    }
    return params


# ------------------------------- BERT forward --------------------------------
@jax.jit
def bert_forward(params, input_ids, attention_mask, token_type_ids, position_ids):
    B, S = input_ids.shape

    # --- embeddings (gathers are XLA glue; LN is a Pallas kernel) ---
    emb = (jnp.take(params["word_emb"], input_ids, axis=0)
           + jnp.take(params["pos_emb"], position_ids, axis=0)
           + jnp.take(params["type_emb"], token_type_ids, axis=0))      # (B,S,H)
    emb2d = emb.reshape(B * S, HIDDEN)
    hidden0 = embedding_layernorm(emb2d, params["emb_ln_g"], params["emb_ln_b"])

    # additive attention-mask bias per batch row: (B, S), HF convention
    mask_bias = (1.0 - attention_mask.astype(jnp.float32)) * -10000.0

    # --- one fused pallas_call for the whole encoder stack ---
    all_layers = encoder(hidden0, mask_bias, params["layers"], batch=B, seq=S)

    hidden_states = (hidden0.reshape(B, S, HIDDEN),) + tuple(
        all_layers[i].reshape(B, S, HIDDEN) for i in range(NUM_LAYERS))
    sequence_output = hidden_states[-1]                                 # (B,S,H)
    pooled_output = pooler(sequence_output[:, 0, :],
                           params["pool_w"], params["pool_b"])          # (B,H)
    return sequence_output, pooled_output, hidden_states


# --------------------------- PretrainedModel wrapper -------------------------
class PretrainedModel:
    """Mirrors the PyTorch module: a frozen BertModel whose forward is a
    pass-through returning (sequence_output, pooled_output, hidden_states)."""

    def __init__(self, key):
        # frozen: stop_gradient mimics requires_grad=False
        self.params = jax.tree_util.tree_map(jax.lax.stop_gradient, init_params(key))

    def __call__(self, input_ids, attention_mask=None, token_type_ids=None,
                 position_ids=None, head_mask=None, labels=None, start_id=None):
        # head_mask / labels / start_id are unused by the reference forward.
        B, S = input_ids.shape
        if attention_mask is None:
            attention_mask = jnp.ones((B, S), jnp.float32)
        if token_type_ids is None:
            token_type_ids = jnp.zeros((B, S), jnp.int32)
        if position_ids is None:
            position_ids = jnp.broadcast_to(jnp.arange(S, dtype=jnp.int32), (B, S))
        return bert_forward(self.params, input_ids, attention_mask,
                            token_type_ids, position_ids)


# ------------------------------------ main ------------------------------------
if __name__ == "__main__":
    key = jax.random.PRNGKey(0)
    model = PretrainedModel(key)

    input_ids = jax.random.randint(jax.random.fold_in(key, 1000),
                                   (BATCH, SEQ), 0, VOCAB_SIZE, dtype=jnp.int32)
    attention_mask = jnp.ones((BATCH, SEQ), jnp.float32)
    token_type_ids = jnp.zeros((BATCH, SEQ), jnp.int32)

    seq_out, pooled_out, hidden_states = model(
        input_ids, attention_mask=attention_mask, token_type_ids=token_type_ids)

    jax.block_until_ready(seq_out)
    jax.block_until_ready(pooled_out)
    for h in hidden_states:
        jax.block_until_ready(h)

    assert seq_out.shape == (BATCH, SEQ, HIDDEN)
    assert pooled_out.shape == (BATCH, HIDDEN)
    assert len(hidden_states) == NUM_LAYERS + 1
    print("KERNEL_OK")
</pallas_src>

<mosaic_0001>
module attributes {stable_mosaic.version = 11 : i64} {
  func.func @_embedding_ln_kernel(%arg0: memref<16x32xf32, #tpu.memory_space<vmem>>, %arg1: memref<1x32xf32, #tpu.memory_space<vmem>>, %arg2: memref<1x32xf32, #tpu.memory_space<vmem>>, %arg3: memref<16x32xf32, #tpu.memory_space<vmem>>) attributes {dimension_semantics = [], scalar_prefetch = 0 : i64, scratch_operands = 0 : i64, tpu.core_type = #tpu.core_type<tc>} {
    %c0 = arith.constant 0 : index
    %c0_0 = arith.constant 0 : index
    %0 = vector.load %arg0[%c0, %c0_0] : memref<16x32xf32, #tpu.memory_space<vmem>>, vector<16x32xf32>
    %c0_1 = arith.constant 0 : index
    %c0_2 = arith.constant 0 : index
    %1 = vector.load %arg1[%c0_1, %c0_2] : memref<1x32xf32, #tpu.memory_space<vmem>>, vector<1x32xf32>
    %c0_3 = arith.constant 0 : index
    %c0_4 = arith.constant 0 : index
    %2 = vector.load %arg2[%c0_3, %c0_4] : memref<1x32xf32, #tpu.memory_space<vmem>>, vector<1x32xf32>
    %cst = arith.constant dense<0.000000e+00> : vector<16xf32>
    %3 = vector.multi_reduction <add>, %0, %cst [1] : vector<16x32xf32> to vector<16xf32>
    %4 = vector.shape_cast %3 : vector<16xf32> to vector<16x1xf32>
    %cst_5 = arith.constant 3.200000e+01 : f32
    %5 = vector.broadcast %cst_5 : f32 to vector<16x1xf32>
    %6 = arith.divf %4, %5 : vector<16x1xf32>
    %7 = vector.broadcast %6 : vector<16x1xf32> to vector<16x32xf32>
    %8 = arith.subf %0, %7 : vector<16x32xf32>
    %9 = arith.mulf %8, %8 : vector<16x32xf32>
    %cst_6 = arith.constant dense<0.000000e+00> : vector<16xf32>
    %10 = vector.multi_reduction <add>, %9, %cst_6 [1] : vector<16x32xf32> to vector<16xf32>
    %11 = vector.shape_cast %10 : vector<16xf32> to vector<16x1xf32>
    %cst_7 = arith.constant 3.200000e+01 : f32
    %12 = vector.broadcast %cst_7 : f32 to vector<16x1xf32>
    %13 = arith.divf %11, %12 : vector<16x1xf32>
    %cst_8 = arith.constant 9.99999996E-13 : f32
    %14 = vector.broadcast %cst_8 : f32 to vector<16x1xf32>
    %15 = arith.addf %13, %14 : vector<16x1xf32>
    %16 = math.rsqrt %15 : vector<16x1xf32>
    %17 = vector.broadcast %6 : vector<16x1xf32> to vector<16x32xf32>
    %18 = arith.subf %0, %17 : vector<16x32xf32>
    %19 = vector.broadcast %16 : vector<16x1xf32> to vector<16x32xf32>
    %20 = arith.mulf %18, %19 : vector<16x32xf32>
    %21 = vector.broadcast %1 : vector<1x32xf32> to vector<16x32xf32>
    %22 = arith.mulf %20, %21 : vector<16x32xf32>
    %23 = vector.broadcast %2 : vector<1x32xf32> to vector<16x32xf32>
    %24 = arith.addf %22, %23 : vector<16x32xf32>
    %c0_9 = arith.constant 0 : index
    %c0_10 = arith.constant 0 : index
    %25 = vector.load %arg3[%c0_9, %c0_10] : memref<16x32xf32, #tpu.memory_space<vmem>>, vector<16x32xf32>
    tpu.vector_store %arg3[%c0_9, %c0_10], %24 {strides = array<i32>} : memref<16x32xf32, #tpu.memory_space<vmem>>, vector<16x32xf32>,
    return
  }
}

module attributes {stable_mosaic.version = 11 : i64} {
  func.func @_encoder_layer_kernel(%arg0: i32, %arg1: memref<16x32xf32, #tpu.memory_space<vmem>>, %arg2: memref<2x8xf32, #tpu.memory_space<vmem>>, %arg3: memref<1x32x96xf32, #tpu.memory_space<vmem>>, %arg4: memref<1x1x96xf32, #tpu.memory_space<vmem>>, %arg5: memref<1x32x32xf32, #tpu.memory_space<vmem>>, %arg6: memref<1x1x32xf32, #tpu.memory_space<vmem>>, %arg7: memref<1x1x32xf32, #tpu.memory_space<vmem>>, %arg8: memref<1x1x32xf32, #tpu.memory_space<vmem>>, %arg9: memref<1x32x64xf32, #tpu.memory_space<vmem>>, %arg10: memref<1x1x64xf32, #tpu.memory_space<vmem>>, %arg11: memref<1x64x32xf32, #tpu.memory_space<vmem>>, %arg12: memref<1x1x32xf32, #tpu.memory_space<vmem>>, %arg13: memref<1x1x32xf32, #tpu.memory_space<vmem>>, %arg14: memref<1x1x32xf32, #tpu.memory_space<vmem>>, %arg15: memref<1x16x32xf32, #tpu.memory_space<vmem>>, %arg16: memref<16x32xf32, #tpu.memory_space<vmem>>) attributes {dimension_semantics = [#tpu.dimension_semantics<arbitrary>], iteration_bounds = array<i64: 2>, scalar_prefetch = 0 : i64, scratch_operands = 1 : i64, tpu.core_type = #tpu.core_type<tc>, window_params = [{pipeline_mode = #tpu.pipeline_mode<synchronous>, transform_indices = @transform_0, window_bounds = array<i64: 16, 32>}, {pipeline_mode = #tpu.pipeline_mode<synchronous>, transform_indices = @transform_1, window_bounds = array<i64: 2, 8>}, {transform_indices = @transform_2, window_bounds = array<i64: 1, 32, 96>}, {transform_indices = @transform_3, window_bounds = array<i64: 1, 1, 96>}, {transform_indices = @transform_4, window_bounds = array<i64: 1, 32, 32>}, {transform_indices = @transform_5, window_bounds = array<i64: 1, 1, 32>}, {transform_indices = @transform_6, window_bounds = array<i64: 1, 1, 32>}, {transform_indices = @transform_7, window_bounds = array<i64: 1, 1, 32>}, {transform_indices = @transform_8, window_bounds = array<i64: 1, 32, 64>}, {transform_indices = @transform_9, window_bounds = array<i64: 1, 1, 64>}, {transform_indices = @transform_10, window_bounds = array<i64: 1, 64, 32>}, {transform_indices = @transform_11, window_bounds = array<i64: 1, 1, 32>}, {transform_indices = @transform_12, window_bounds = array<i64: 1, 1, 32>}, {transform_indices = @transform_13, window_bounds = array<i64: 1, 1, 32>}, {transform_indices = @transform_14, window_bounds = array<i64: 1, 16, 32>}]} {
    %c0_i32 = arith.constant 0 : i32
    %0 = arith.cmpi eq, %arg0, %c0_i32 : i32
    %1 = arith.extui %0 : i1 to i32
    %c0_i32_0 = arith.constant 0 : i32
    %2 = arith.cmpi ne, %1, %c0_i32_0 : i32
    scf.if %2 {
      %c0_82 = arith.constant 0 : index
      %c0_83 = arith.constant 0 : index
      %188 = vector.load %arg1[%c0_82, %c0_83] : memref<16x32xf32, #tpu.memory_space<vmem>>, vector<16x32xf32>
      %c0_84 = arith.constant 0 : index
      %c0_85 = arith.constant 0 : index
      %189 = vector.load %arg16[%c0_84, %c0_85] : memref<16x32xf32, #tpu.memory_space<vmem>>, vector<16x32xf32>
      tpu.vector_store %arg16[%c0_84, %c0_85], %188 {strides = array<i32>} : memref<16x32xf32, #tpu.memory_space<vmem>>, vector<16x32xf32>,
    } else {
    }
    %c0 = arith.constant 0 : index
    %c0_1 = arith.constant 0 : index
    %3 = vector.load %arg16[%c0, %c0_1] : memref<16x32xf32, #tpu.memory_space<vmem>>, vector<16x32xf32>
    %c0_2 = arith.constant 0 : index
    %c0_3 = arith.constant 0 : index
    %c0_4 = arith.constant 0 : index
    %4 = vector.load %arg3[%c0_2, %c0_3, %c0_4] : memref<1x32x96xf32, #tpu.memory_space<vmem>>, vector<1x32x96xf32>
    %5 = vector.shape_cast %4 : vector<1x32x96xf32> to vector<32x96xf32>
    %cst = arith.constant dense<0.000000e+00> : vector<16x96xf32>
    %6 = tpu.matmul %3, %5, %cst {dimension_numbers = #tpu.dot_dimension_numbers<[1], [0], [0], [1], [0, 0, 1, 1], [], []>} : vector<16x32xf32>, vector<32x96xf32>, vector<16x96xf32> -> vector<16x96xf32>
    %c0_5 = arith.constant 0 : index
    %c0_6 = arith.constant 0 : index
    %c0_7 = arith.constant 0 : index
    %7 = vector.load %arg4[%c0_5, %c0_6, %c0_7] : memref<1x1x96xf32, #tpu.memory_space<vmem>>, vector<1x1x96xf32>
    %8 = vector.shape_cast %7 : vector<1x1x96xf32> to vector<1x96xf32>
    %9 = vector.broadcast %8 : vector<1x96xf32> to vector<16x96xf32>
    %10 = arith.addf %6, %9 : vector<16x96xf32>
    %11 = vector.extract_strided_slice %10 {offsets = [0, 0], sizes = [16, 32], strides = [1, 1]} : vector<16x96xf32> to vector<16x32xf32>
    %12 = vector.extract_strided_slice %10 {offsets = [0, 32], sizes = [16, 32], strides = [1, 1]} : vector<16x96xf32> to vector<16x32xf32>
    %13 = vector.extract_strided_slice %10 {offsets = [0, 64], sizes = [16, 32], strides = [1, 1]} : vector<16x96xf32> to vector<16x32xf32>
    %c0_8 = arith.constant 0 : index
    %c0_9 = arith.constant 0 : index
    %14 = vector.load %arg2[%c0_8, %c0_9] : memref<2x8xf32, #tpu.memory_space<vmem>>, vector<2x8xf32>
    %15 = vector.extract_strided_slice %14 {offsets = [0, 0], sizes = [1, 8], strides = [1, 1]} : vector<2x8xf32> to vector<1x8xf32>
    %16 = vector.extract_strided_slice %11 {offsets = [0, 0], sizes = [8, 16], strides = [1, 1]} : vector<16x32xf32> to vector<8x16xf32>
    %17 = vector.extract_strided_slice %12 {offsets = [0, 0], sizes = [8, 16], strides = [1, 1]} : vector<16x32xf32> to vector<8x16xf32>
    %18 = vector.extract_strided_slice %13 {offsets = [0, 0], sizes = [8, 16], strides = [1, 1]} : vector<16x32xf32> to vector<8x16xf32>
    %cst_10 = arith.constant dense<0.000000e+00> : vector<8x8xf32>
    %19 = tpu.matmul %16, %17, %cst_10 {dimension_numbers = #tpu.dot_dimension_numbers<[1], [1], [0], [0], [0, 0, 1, 0], [], []>} : vector<8x16xf32>, vector<8x16xf32>, vector<8x8xf32> -> vector<8x8xf32>
    %cst_11 = arith.constant 2.500000e-01 : f32
    %20 = vector.broadcast %cst_11 : f32 to vector<8x8xf32>
    %21 = arith.mulf %19, %20 : vector<8x8xf32>
    %22 = vector.broadcast %15 : vector<1x8xf32> to vector<8x8xf32>
    %23 = arith.addf %21, %22 : vector<8x8xf32>
    %cst_12 = arith.constant dense<0xFF800000> : vector<8xf32>
    %24 = vector.multi_reduction <maximumf>, %23, %cst_12 [1] : vector<8x8xf32> to vector<8xf32>
    %25 = vector.shape_cast %24 : vector<8xf32> to vector<8x1xf32>
    %26 = vector.broadcast %25 : vector<8x1xf32> to vector<8x8xf32>
    %27 = arith.subf %23, %26 : vector<8x8xf32>
    %28 = math.exp %27 : vector<8x8xf32>
    %cst_13 = arith.constant dense<0.000000e+00> : vector<8xf32>
    %29 = vector.multi_reduction <add>, %28, %cst_13 [1] : vector<8x8xf32> to vector<8xf32>
    %30 = vector.shape_cast %29 : vector<8xf32> to vector<8x1xf32>
    %31 = tpu.reciprocal %30 {approx = true} : vector<8x1xf32> -> vector<8x1xf32>
    %32 = vector.broadcast %31 : vector<8x1xf32> to vector<8x8xf32>
    %33 = arith.mulf %28, %32 : vector<8x8xf32>
    %cst_14 = arith.constant dense<0.000000e+00> : vector<8x16xf32>
    %34 = tpu.matmul %33, %18, %cst_14 {dimension_numbers = #tpu.dot_dimension_numbers<[1], [0], [0], [1], [0, 0, 1, 1], [], []>} : vector<8x8xf32>, vector<8x16xf32>, vector<8x16xf32> -> vector<8x16xf32>
    %35 = vector.extract_strided_slice %11 {offsets = [0, 16], sizes = [8, 16], strides = [1, 1]} : vector<16x32xf32> to vector<8x16xf32>
    %36 = vector.extract_strided_slice %12 {offsets = [0, 16], sizes = [8, 16], strides = [1, 1]} : vector<16x32xf32> to vector<8x16xf32>
    %37 = vector.extract_strided_slice %13 {offsets = [0, 16], sizes = [8, 16], strides = [1, 1]} : vector<16x32xf32> to vector<8x16xf32>
    %cst_15 = arith.constant dense<0.000000e+00> : vector<8x8xf32>
    %38 = tpu.matmul %35, %36, %cst_15 {dimension_numbers = #tpu.dot_dimension_numbers<[1], [1], [0], [0], [0, 0, 1, 0], [], []>} : vector<8x16xf32>, vector<8x16xf32>, vector<8x8xf32> -> vector<8x8xf32>
    %cst_16 = arith.constant 2.500000e-01 : f32
    %39 = vector.broadcast %cst_16 : f32 to vector<8x8xf32>
    %40 = arith.mulf %38, %39 : vector<8x8xf32>
    %41 = vector.broadcast %15 : vector<1x8xf32> to vector<8x8xf32>
    %42 = arith.addf %40, %41 : vector<8x8xf32>
    %cst_17 = arith.constant dense<0xFF800000> : vector<8xf32>
    %43 = vector.multi_reduction <maximumf>, %42, %cst_17 [1] : vector<8x8xf32> to vector<8xf32>
    %44 = vector.shape_cast %43 : vector<8xf32> to vector<8x1xf32>
    %45 = vector.broadcast %44 : vector<8x1xf32> to vector<8x8xf32>
    %46 = arith.subf %42, %45 : vector<8x8xf32>
    %47 = math.exp %46 : vector<8x8xf32>
    %cst_18 = arith.constant dense<0.000000e+00> : vector<8xf32>
    %48 = vector.multi_reduction <add>, %47, %cst_18 [1] : vector<8x8xf32> to vector<8xf32>
    %49 = vector.shape_cast %48 : vector<8xf32> to vector<8x1xf32>
    %50 = tpu.reciprocal %49 {approx = true} : vector<8x1xf32> -> vector<8x1xf32>
    %51 = vector.broadcast %50 : vector<8x1xf32> to vector<8x8xf32>
    %52 = arith.mulf %47, %51 : vector<8x8xf32>
    %cst_19 = arith.constant dense<0.000000e+00> : vector<8x16xf32>
    %53 = tpu.matmul %52, %37, %cst_19 {dimension_numbers = #tpu.dot_dimension_numbers<[1], [0], [0], [1], [0, 0, 1, 1], [], []>} : vector<8x8xf32>, vector<8x16xf32>, vector<8x16xf32> -> vector<8x16xf32>
    %54 = tpu.concatenate %34, %53 in 1 : vector<8x16xf32>, vector<8x16xf32> -> vector<8x32xf32>
    %55 = vector.extract_strided_slice %14 {offsets = [1, 0], sizes = [1, 8], strides = [1, 1]} : vector<2x8xf32> to vector<1x8xf32>
    %56 = vector.extract_strided_slice %11 {offsets = [8, 0], sizes = [8, 16], strides = [1, 1]} : vector<16x32xf32> to vector<8x16xf32>
    %57 = vector.extract_strided_slice %12 {offsets = [8, 0], sizes = [8, 16], strides = [1, 1]} : vector<16x32xf32> to vector<8x16xf32>
    %58 = vector.extract_strided_slice %13 {offsets = [8, 0], sizes = [8, 16], strides = [1, 1]} : vector<16x32xf32> to vector<8x16xf32>
    %cst_20 = arith.constant dense<0.000000e+00> : vector<8x8xf32>
    %59 = tpu.matmul %56, %57, %cst_20 {dimension_numbers = #tpu.dot_dimension_numbers<[1], [1], [0], [0], [0, 0, 1, 0], [], []>} : vector<8x16xf32>, vector<8x16xf32>, vector<8x8xf32> -> vector<8x8xf32>
    %cst_21 = arith.constant 2.500000e-01 : f32
    %60 = vector.broadcast %cst_21 : f32 to vector<8x8xf32>
    %61 = arith.mulf %59, %60 : vector<8x8xf32>
    %62 = vector.broadcast %55 : vector<1x8xf32> to vector<8x8xf32>
    %63 = arith.addf %61, %62 : vector<8x8xf32>
    %cst_22 = arith.constant dense<0xFF800000> : vector<8xf32>
    %64 = vector.multi_reduction <maximumf>, %63, %cst_22 [1] : vector<8x8xf32> to vector<8xf32>
    %65 = vector.shape_cast %64 : vector<8xf32> to vector<8x1xf32>
    %66 = vector.broadcast %65 : vector<8x1xf32> to vector<8x8xf32>
    %67 = arith.subf %63, %66 : vector<8x8xf32>
    %68 = math.exp %67 : vector<8x8xf32>
    %cst_23 = arith.constant dense<0.000000e+00> : vector<8xf32>
    %69 = vector.multi_reduction <add>, %68, %cst_23 [1] : vector<8x8xf32> to vector<8xf32>
    %70 = vector.shape_cast %69 : vector<8xf32> to vector<8x1xf32>
    %71 = tpu.reciprocal %70 {approx = true} : vector<8x1xf32> -> vector<8x1xf32>
    %72 = vector.broadcast %71 : vector<8x1xf32> to vector<8x8xf32>
    %73 = arith.mulf %68, %72 : vector<8x8xf32>
    %cst_24 = arith.constant dense<0.000000e+00> : vector<8x16xf32>
    %74 = tpu.matmul %73, %58, %cst_24 {dimension_numbers = #tpu.dot_dimension_numbers<[1], [0], [0], [1], [0, 0, 1, 1], [], []>} : vector<8x8xf32>, vector<8x16xf32>, vector<8x16xf32> -> vector<8x16xf32>
    %75 = vector.extract_strided_slice %11 {offsets = [8, 16], sizes = [8, 16], strides = [1, 1]} : vector<16x32xf32> to vector<8x16xf32>
    %76 = vector.extract_strided_slice %12 {offsets = [8, 16], sizes = [8, 16], strides = [1, 1]} : vector<16x32xf32> to vector<8x16xf32>
    %77 = vector.extract_strided_slice %13 {offsets = [8, 16], sizes = [8, 16], strides = [1, 1]} : vector<16x32xf32> to vector<8x16xf32>
    %cst_25 = arith.constant dense<0.000000e+00> : vector<8x8xf32>
    %78 = tpu.matmul %75, %76, %cst_25 {dimension_numbers = #tpu.dot_dimension_numbers<[1], [1], [0], [0], [0, 0, 1, 0], [], []>} : vector<8x16xf32>, vector<8x16xf32>, vector<8x8xf32> -> vector<8x8xf32>
    %cst_26 = arith.constant 2.500000e-01 : f32
    %79 = vector.broadcast %cst_26 : f32 to vector<8x8xf32>
    %80 = arith.mulf %78, %79 : vector<8x8xf32>
    %81 = vector.broadcast %55 : vector<1x8xf32> to vector<8x8xf32>
    %82 = arith.addf %80, %81 : vector<8x8xf32>
    %cst_27 = arith.constant dense<0xFF800000> : vector<8xf32>
    %83 = vector.multi_reduction <maximumf>, %82, %cst_27 [1] : vector<8x8xf32> to vector<8xf32>
    %84 = vector.shape_cast %83 : vector<8xf32> to vector<8x1xf32>
    %85 = vector.broadcast %84 : vector<8x1xf32> to vector<8x8xf32>
    %86 = arith.subf %82, %85 : vector<8x8xf32>
    %87 = math.exp %86 : vector<8x8xf32>
    %cst_28 = arith.constant dense<0.000000e+00> : vector<8xf32>
    %88 = vector.multi_reduction <add>, %87, %cst_28 [1] : vector<8x8xf32> to vector<8xf32>
    %89 = vector.shape_cast %88 : vector<8xf32> to vector<8x1xf32>
    %90 = tpu.reciprocal %89 {approx = true} : vector<8x1xf32> -> vector<8x1xf32>
    %91 = vector.broadcast %90 : vector<8x1xf32> to vector<8x8xf32>
    %92 = arith.mulf %87, %91 : vector<8x8xf32>
    %cst_29 = arith.constant dense<0.000000e+00> : vector<8x16xf32>
    %93 = tpu.matmul %92, %77, %cst_29 {dimension_numbers = #tpu.dot_dimension_numbers<[1], [0], [0], [1], [0, 0, 1, 1], [], []>} : vector<8x8xf32>, vector<8x16xf32>, vector<8x16xf32> -> vector<8x16xf32>
    %94 = tpu.concatenate %74, %93 in 1 : vector<8x16xf32>, vector<8x16xf32> -> vector<8x32xf32>
    %95 = tpu.concatenate %54, %94 in 0 : vector<8x32xf32>, vector<8x32xf32> -> vector<16x32xf32>
    %c0_30 = arith.constant 0 : index
    %c0_31 = arith.constant 0 : index
    %c0_32 = arith.constant 0 : index
    %96 = vector.load %arg5[%c0_30, %c0_31, %c0_32] : memref<1x32x32xf32, #tpu.memory_space<vmem>>, vector<1x32x32xf32>
    %97 = vector.shape_cast %96 : vector<1x32x32xf32> to vector<32x32xf32>
    %cst_33 = arith.constant dense<0.000000e+00> : vector<16x32xf32>
    %98 = tpu.matmul %95, %97, %cst_33 {dimension_numbers = #tpu.dot_dimension_numbers<[1], [0], [0], [1], [0, 0, 1, 1], [], []>} : vector<16x32xf32>, vector<32x32xf32>, vector<16x32xf32> -> vector<16x32xf32>
    %c0_34 = arith.constant 0 : index
    %c0_35 = arith.constant 0 : index
    %c0_36 = arith.constant 0 : index
    %99 = vector.load %arg6[%c0_34, %c0_35, %c0_36] : memref<1x1x32xf32, #tpu.memory_space<vmem>>, vector<1x1x32xf32>
    %100 = vector.shape_cast %99 : vector<1x1x32xf32> to vector<1x32xf32>
    %101 = vector.broadcast %100 : vector<1x32xf32> to vector<16x32xf32>
    %102 = arith.addf %98, %101 : vector<16x32xf32>
    %103 = arith.addf %102, %3 : vector<16x32xf32>
    %c0_37 = arith.constant 0 : index
    %c0_38 = arith.constant 0 : index
    %c0_39 = arith.constant 0 : index
    %104 = vector.load %arg7[%c0_37, %c0_38, %c0_39] : memref<1x1x32xf32, #tpu.memory_space<vmem>>, vector<1x1x32xf32>
    %105 = vector.shape_cast %104 : vector<1x1x32xf32> to vector<1x32xf32>
    %c0_40 = arith.constant 0 : index
    %c0_41 = arith.constant 0 : index
    %c0_42 = arith.constant 0 : index
    %106 = vector.load %arg8[%c0_40, %c0_41, %c0_42] : memref<1x1x32xf32, #tpu.memory_space<vmem>>, vector<1x1x32xf32>
    %107 = vector.shape_cast %106 : vector<1x1x32xf32> to vector<1x32xf32>
    %cst_43 = arith.constant dense<0.000000e+00> : vector<16xf32>
    %108 = vector.multi_reduction <add>, %103, %cst_43 [1] : vector<16x32xf32> to vector<16xf32>
    %109 = vector.shape_cast %108 : vector<16xf32> to vector<16x1xf32>
    %cst_44 = arith.constant 3.200000e+01 : f32
    %110 = vector.broadcast %cst_44 : f32 to vector<16x1xf32>
    %111 = arith.divf %109, %110 : vector<16x1xf32>
    %112 = vector.broadcast %111 : vector<16x1xf32> to vector<16x32xf32>
    %113 = arith.subf %103, %112 : vector<16x32xf32>
    %114 = arith.mulf %113, %113 : vector<16x32xf32>
    %cst_45 = arith.constant dense<0.000000e+00> : vector<16xf32>
    %115 = vector.multi_reduction <add>, %114, %cst_45 [1] : vector<16x32xf32> to vector<16xf32>
    %116 = vector.shape_cast %115 : vector<16xf32> to vector<16x1xf32>
    %cst_46 = arith.constant 3.200000e+01 : f32
    %117 = vector.broadcast %cst_46 : f32 to vector<16x1xf32>
    %118 = arith.divf %116, %117 : vector<16x1xf32>
    %cst_47 = arith.constant 9.99999996E-13 : f32
    %119 = vector.broadcast %cst_47 : f32 to vector<16x1xf32>
    %120 = arith.addf %118, %119 : vector<16x1xf32>
    %121 = math.rsqrt %120 : vector<16x1xf32>
    %122 = vector.broadcast %111 : vector<16x1xf32> to vector<16x32xf32>
    %123 = arith.subf %103, %122 : vector<16x32xf32>
    %124 = vector.broadcast %121 : vector<16x1xf32> to vector<16x32xf32>
    %125 = arith.mulf %123, %124 : vector<16x32xf32>
    %126 = vector.broadcast %105 : vector<1x32xf32> to vector<16x32xf32>
    %127 = arith.mulf %125, %126 : vector<16x32xf32>
    %128 = vector.broadcast %107 : vector<1x32xf32> to vector<16x32xf32>
    %129 = arith.addf %127, %128 : vector<16x32xf32>
    %c0_48 = arith.constant 0 : index
    %c0_49 = arith.constant 0 : index
    %c0_50 = arith.constant 0 : index
    %130 = vector.load %arg9[%c0_48, %c0_49, %c0_50] : memref<1x32x64xf32, #tpu.memory_space<vmem>>, vector<1x32x64xf32>
    %131 = vector.shape_cast %130 : vector<1x32x64xf32> to vector<32x64xf32>
    %cst_51 = arith.constant dense<0.000000e+00> : vector<16x64xf32>
    %132 = tpu.matmul %129, %131, %cst_51 {dimension_numbers = #tpu.dot_dimension_numbers<[1], [0], [0], [1], [0, 0, 1, 1], [], []>} : vector<16x32xf32>, vector<32x64xf32>, vector<16x64xf32> -> vector<16x64xf32>
    %c0_52 = arith.constant 0 : index
    %c0_53 = arith.constant 0 : index
    %c0_54 = arith.constant 0 : index
    %133 = vector.load %arg10[%c0_52, %c0_53, %c0_54] : memref<1x1x64xf32, #tpu.memory_space<vmem>>, vector<1x1x64xf32>
    %134 = vector.shape_cast %133 : vector<1x1x64xf32> to vector<1x64xf32>
    %135 = vector.broadcast %134 : vector<1x64xf32> to vector<16x64xf32>
    %136 = arith.addf %132, %135 : vector<16x64xf32>
    %137 = arith.mulf %136, %136 : vector<16x64xf32>
    %138 = arith.mulf %136, %137 : vector<16x64xf32>
    %cst_55 = arith.constant 4.471500e-02 : f32
    %139 = vector.broadcast %cst_55 : f32 to vector<16x64xf32>
    %140 = arith.mulf %139, %138 : vector<16x64xf32>
    %141 = arith.addf %136, %140 : vector<16x64xf32>
    %cst_56 = arith.constant 0.797884583 : f32
    %142 = vector.broadcast %cst_56 : f32 to vector<16x64xf32>
    %143 = arith.mulf %142, %141 : vector<16x64xf32>
    %144 = math.tanh %143 : vector<16x64xf32>
    %cst_57 = arith.constant 1.000000e+00 : f32
    %145 = vector.broadcast %cst_57 : f32 to vector<16x64xf32>
    %146 = arith.addf %145, %144 : vector<16x64xf32>
    %cst_58 = arith.constant 5.000000e-01 : f32
    %147 = vector.broadcast %cst_58 : f32 to vector<16x64xf32>
    %148 = arith.mulf %147, %146 : vector<16x64xf32>
    %149 = arith.mulf %136, %148 : vector<16x64xf32>
    %c0_59 = arith.constant 0 : index
    %c0_60 = arith.constant 0 : index
    %c0_61 = arith.constant 0 : index
    %150 = vector.load %arg11[%c0_59, %c0_60, %c0_61] : memref<1x64x32xf32, #tpu.memory_space<vmem>>, vector<1x64x32xf32>
    %151 = vector.shape_cast %150 : vector<1x64x32xf32> to vector<64x32xf32>
    %cst_62 = arith.constant dense<0.000000e+00> : vector<16x32xf32>
    %152 = tpu.matmul %149, %151, %cst_62 {dimension_numbers = #tpu.dot_dimension_numbers<[1], [0], [0], [1], [0, 0, 1, 1], [], []>} : vector<16x64xf32>, vector<64x32xf32>, vector<16x32xf32> -> vector<16x32xf32>
    %c0_63 = arith.constant 0 : index
    %c0_64 = arith.constant 0 : index
    %c0_65 = arith.constant 0 : index
    %153 = vector.load %arg12[%c0_63, %c0_64, %c0_65] : memref<1x1x32xf32, #tpu.memory_space<vmem>>, vector<1x1x32xf32>
    %154 = vector.shape_cast %153 : vector<1x1x32xf32> to vector<1x32xf32>
    %155 = vector.broadcast %154 : vector<1x32xf32> to vector<16x32xf32>
    %156 = arith.addf %152, %155 : vector<16x32xf32>
    %157 = arith.addf %156, %129 : vector<16x32xf32>
    %c0_66 = arith.constant 0 : index
    %c0_67 = arith.constant 0 : index
    %c0_68 = arith.constant 0 : index
    %158 = vector.load %arg13[%c0_66, %c0_67, %c0_68] : memref<1x1x32xf32, #tpu.memory_space<vmem>>, vector<1x1x32xf32>
    %159 = vector.shape_cast %158 : vector<1x1x32xf32> to vector<1x32xf32>
    %c0_69 = arith.constant 0 : index
    %c0_70 = arith.constant 0 : index
    %c0_71 = arith.constant 0 : index
    %160 = vector.load %arg14[%c0_69, %c0_70, %c0_71] : memref<1x1x32xf32, #tpu.memory_space<vmem>>, vector<1x1x32xf32>
    %161 = vector.shape_cast %160 : vector<1x1x32xf32> to vector<1x32xf32>
    %cst_72 = arith.constant dense<0.000000e+00> : vector<16xf32>
    %162 = vector.multi_reduction <add>, %157, %cst_72 [1] : vector<16x32xf32> to vector<16xf32>
    %163 = vector.shape_cast %162 : vector<16xf32> to vector<16x1xf32>
    %cst_73 = arith.constant 3.200000e+01 : f32
    %164 = vector.broadcast %cst_73 : f32 to vector<16x1xf32>
    %165 = arith.divf %163, %164 : vector<16x1xf32>
    %166 = vector.broadcast %165 : vector<16x1xf32> to vector<16x32xf32>
    %167 = arith.subf %157, %166 : vector<16x32xf32>
    %168 = arith.mulf %167, %167 : vector<16x32xf32>
    %cst_74 = arith.constant dense<0.000000e+00> : vector<16xf32>
    %169 = vector.multi_reduction <add>, %168, %cst_74 [1] : vector<16x32xf32> to vector<16xf32>
    %170 = vector.shape_cast %169 : vector<16xf32> to vector<16x1xf32>
    %cst_75 = arith.constant 3.200000e+01 : f32
    %171 = vector.broadcast %cst_75 : f32 to vector<16x1xf32>
    %172 = arith.divf %170, %171 : vector<16x1xf32>
    %cst_76 = arith.constant 9.99999996E-13 : f32
    %173 = vector.broadcast %cst_76 : f32 to vector<16x1xf32>
    %174 = arith.addf %172, %173 : vector<16x1xf32>
    %175 = math.rsqrt %174 : vector<16x1xf32>
    %176 = vector.broadcast %165 : vector<16x1xf32> to vector<16x32xf32>
    %177 = arith.subf %157, %176 : vector<16x32xf32>
    %178 = vector.broadcast %175 : vector<16x1xf32> to vector<16x32xf32>
    %179 = arith.mulf %177, %178 : vector<16x32xf32>
    %180 = vector.broadcast %159 : vector<1x32xf32> to vector<16x32xf32>
    %181 = arith.mulf %179, %180 : vector<16x32xf32>
    %182 = vector.broadcast %161 : vector<1x32xf32> to vector<16x32xf32>
    %183 = arith.addf %181, %182 : vector<16x32xf32>
    %c0_77 = arith.constant 0 : index
    %c0_78 = arith.constant 0 : index
    %184 = vector.load %arg16[%c0_77, %c0_78] : memref<16x32xf32, #tpu.memory_space<vmem>>, vector<16x32xf32>
    tpu.vector_store %arg16[%c0_77, %c0_78], %183 {strides = array<i32>} : memref<16x32xf32, #tpu.memory_space<vmem>>, vector<16x32xf32>,
    %c0_79 = arith.constant 0 : index
    %c0_80 = arith.constant 0 : index
    %c0_81 = arith.constant 0 : index
    %185 = vector.load %arg15[%c0_79, %c0_80, %c0_81] : memref<1x16x32xf32, #tpu.memory_space<vmem>>, vector<1x16x32xf32>
    %186 = vector.shape_cast %185 : vector<1x16x32xf32> to vector<16x32xf32>
    %187 = vector.shape_cast %183 : vector<16x32xf32> to vector<1x16x32xf32>
    tpu.vector_store %arg15[%c0_79, %c0_80, %c0_81], %187 {strides = array<i32>} : memref<1x16x32xf32, #tpu.memory_space<vmem>>, vector<1x16x32xf32>,
    return
  }
  func.func @transform_0(%arg0: i32) -> (i32, i32) {
    %c0_i32 = arith.constant 0 : i32
    %c0_i32_0 = arith.constant 0 : i32
    %c0_i32_1 = arith.constant 0 : i32
    return %c0_i32, %c0_i32_0 : i32, i32
  }
  func.func @transform_1(%arg0: i32) -> (i32, i32) {
    %c0_i32 = arith.constant 0 : i32
    %c0_i32_0 = arith.constant 0 : i32
    %c0_i32_1 = arith.constant 0 : i32
    return %c0_i32, %c0_i32_0 : i32, i32
  }
  func.func @transform_2(%arg0: i32) -> (i32, i32, i32) {
    %c0_i32 = arith.constant 0 : i32
    %c0_i32_0 = arith.constant 0 : i32
    %c0_i32_1 = arith.constant 0 : i32
    return %arg0, %c0_i32, %c0_i32_0 : i32, i32, i32
  }
  func.func @transform_3(%arg0: i32) -> (i32, i32, i32) {
    %c0_i32 = arith.constant 0 : i32
    %c0_i32_0 = arith.constant 0 : i32
    %c0_i32_1 = arith.constant 0 : i32
    return %arg0, %c0_i32, %c0_i32_0 : i32, i32, i32
  }
  func.func @transform_4(%arg0: i32) -> (i32, i32, i32) {
    %c0_i32 = arith.constant 0 : i32
    %c0_i32_0 = arith.constant 0 : i32
    %c0_i32_1 = arith.constant 0 : i32
    return %arg0, %c0_i32, %c0_i32_0 : i32, i32, i32
  }
  func.func @transform_5(%arg0: i32) -> (i32, i32, i32) {
    %c0_i32 = arith.constant 0 : i32
    %c0_i32_0 = arith.constant 0 : i32
    %c0_i32_1 = arith.constant 0 : i32
    return %arg0, %c0_i32, %c0_i32_0 : i32, i32, i32
  }
  func.func @transform_6(%arg0: i32) -> (i32, i32, i32) {
    %c0_i32 = arith.constant 0 : i32
    %c0_i32_0 = arith.constant 0 : i32
    %c0_i32_1 = arith.constant 0 : i32
    return %arg0, %c0_i32, %c0_i32_0 : i32, i32, i32
  }
  func.func @transform_7(%arg0: i32) -> (i32, i32, i32) {
    %c0_i32 = arith.constant 0 : i32
    %c0_i32_0 = arith.constant 0 : i32
    %c0_i32_1 = arith.constant 0 : i32
    return %arg0, %c0_i32, %c0_i32_0 : i32, i32, i32
  }
  func.func @transform_8(%arg0: i32) -> (i32, i32, i32) {
    %c0_i32 = arith.constant 0 : i32
    %c0_i32_0 = arith.constant 0 : i32
    %c0_i32_1 = arith.constant 0 : i32
    return %arg0, %c0_i32, %c0_i32_0 : i32, i32, i32
  }
  func.func @transform_9(%arg0: i32) -> (i32, i32, i32) {
    %c0_i32 = arith.constant 0 : i32
    %c0_i32_0 = arith.constant 0 : i32
    %c0_i32_1 = arith.constant 0 : i32
    return %arg0, %c0_i32, %c0_i32_0 : i32, i32, i32
  }
  func.func @transform_10(%arg0: i32) -> (i32, i32, i32) {
    %c0_i32 = arith.constant 0 : i32
    %c0_i32_0 = arith.constant 0 : i32
    %c0_i32_1 = arith.constant 0 : i32
    return %arg0, %c0_i32, %c0_i32_0 : i32, i32, i32
  }
  func.func @transform_11(%arg0: i32) -> (i32, i32, i32) {
    %c0_i32 = arith.constant 0 : i32
    %c0_i32_0 = arith.constant 0 : i32
    %c0_i32_1 = arith.constant 0 : i32
    return %arg0, %c0_i32, %c0_i32_0 : i32, i32, i32
  }
  func.func @transform_12(%arg0: i32) -> (i32, i32, i32) {
    %c0_i32 = arith.constant 0 : i32
    %c0_i32_0 = arith.constant 0 : i32
    %c0_i32_1 = arith.constant 0 : i32
    return %arg0, %c0_i32, %c0_i32_0 : i32, i32, i32
  }
  func.func @transform_13(%arg0: i32) -> (i32, i32, i32) {
    %c0_i32 = arith.constant 0 : i32
    %c0_i32_0 = arith.constant 0 : i32
    %c0_i32_1 = arith.constant 0 : i32
    return %arg0, %c0_i32, %c0_i32_0 : i32, i32, i32
  }
  func.func @transform_14(%arg0: i32) -> (i32, i32, i32) {
    %c0_i32 = arith.constant 0 : i32
    %c0_i32_0 = arith.constant 0 : i32
    %c0_i32_1 = arith.constant 0 : i32
    return %arg0, %c0_i32, %c0_i32_0 : i32, i32, i32
  }
}

module attributes {stable_mosaic.version = 11 : i64} {
  func.func @_pooler_kernel(%arg0: memref<2x32xf32, #tpu.memory_space<vmem>>, %arg1: memref<32x32xf32, #tpu.memory_space<vmem>>, %arg2: memref<1x32xf32, #tpu.memory_space<vmem>>, %arg3: memref<2x32xf32, #tpu.memory_space<vmem>>) attributes {dimension_semantics = [], scalar_prefetch = 0 : i64, scratch_operands = 0 : i64, tpu.core_type = #tpu.core_type<tc>} {
    %c0 = arith.constant 0 : index
    %c0_0 = arith.constant 0 : index
    %0 = vector.load %arg0[%c0, %c0_0] : memref<2x32xf32, #tpu.memory_space<vmem>>, vector<2x32xf32>
    %c0_1 = arith.constant 0 : index
    %c0_2 = arith.constant 0 : index
    %1 = vector.load %arg1[%c0_1, %c0_2] : memref<32x32xf32, #tpu.memory_space<vmem>>, vector<32x32xf32>
    %cst = arith.constant dense<0.000000e+00> : vector<2x32xf32>
    %2 = tpu.matmul %0, %1, %cst {dimension_numbers = #tpu.dot_dimension_numbers<[1], [0], [0], [1], [0, 0, 1, 1], [], []>} : vector<2x32xf32>, vector<32x32xf32>, vector<2x32xf32> -> vector<2x32xf32>
    %c0_3 = arith.constant 0 : index
    %c0_4 = arith.constant 0 : index
    %3 = vector.load %arg2[%c0_3, %c0_4] : memref<1x32xf32, #tpu.memory_space<vmem>>, vector<1x32xf32>
    %4 = vector.broadcast %3 : vector<1x32xf32> to vector<2x32xf32>
    %5 = arith.addf %2, %4 : vector<2x32xf32>
    %6 = math.tanh %5 : vector<2x32xf32>
    %c0_5 = arith.constant 0 : index
    %c0_6 = arith.constant 0 : index
    %7 = vector.load %arg3[%c0_5, %c0_6] : memref<2x32xf32, #tpu.memory_space<vmem>>, vector<2x32xf32>
    tpu.vector_store %arg3[%c0_5, %c0_6], %6 {strides = array<i32>} : memref<2x32xf32, #tpu.memory_space<vmem>>, vector<2x32xf32>,
    return
  }
}

</mosaic_0001>

<llo_original>
// kernel: bert_forward.3
$region0: #{bert_forward.3}
  #allocation0 [shape = 'u32[]', space=smem, size = 0x4, offset = 0x4, fixed_abs, tag = 'smem constant byte address 0x4 - core index']
  #allocation1 [shape = 'u32[72,128]{1,0:T(1,128)}', space=vmem, size = 0x9000, scoped, tag = 'internal scratch']
  %s0 = inlined_call_operand.vmem [shape: f32[16,32], index: 0, kind: input, shape index: {}]
  %s1 = inlined_call_operand.vmem [shape: f32[1,32], index: 1, kind: input, shape index: {}]
  %s2 = inlined_call_operand.vmem [shape: f32[1,32], index: 2, kind: input, shape index: {}]
  %s3 = inlined_call_operand.vmem [shape: f32[16,32], index: 3, kind: output, shape index: {}]
  %s4 = sld [smem:[#allocation0]]
  $region22: #{bert_forward.3} parent=0
    _
  %s6 = ssub.s32 1, %s4
  %s7 = scalar_select 0, %s6, %s4
  // Predicated region
  $region2: #{bert_forward.3} parent=0 // pred_check
    _
  $region3: #{bert_forward.3} parent=0 // pred_check_branch
    %9 = sbr.rel (0) target = $region5
  $region4: #{bert_forward.3} parent=0 // pred_region
    _
  $region5: #{bert_forward.3} parent=0 // pred_fallthru
    _
  // Predicated region
  $region6: #{bert_forward.3} parent=0 // pred_check
    _
  $region7: #{bert_forward.3} parent=0 // pred_check_branch
    %11 = sbr.rel (0) target = $region9
  $region8: #{bert_forward.3} parent=0 // pred_region
    _
  $region9: #{bert_forward.3} parent=0 // pred_fallthru
    _
  // Predicated region
  $region10: #{bert_forward.3} parent=0 // pred_check
    _
  $region11: #{bert_forward.3} parent=0 // pred_check_branch
    %13 = sbr.rel (0) target = $region13
  $region12: #{bert_forward.3} parent=0 // pred_region
    _
  $region13: #{bert_forward.3} parent=0 // pred_fallthru
    _
  %v14 = vld [vmem:[%s0] sm:$0xff]
  %v15 = vld [vmem:[%s0 + $0x8] sm:$0xff]
  %v16 = vld [vmem:[%s1] sm:$0x1]
  %v17 = vld [vmem:[%s2] sm:$0x1]
  %vm18 = vcmask 261120
  %v19 = vsel %vm18, %v14, 0.0
  %20 = vadd.xlane.f32.xlu0 %v19
  %v21 = vpop.xlane.xlu0 %20
  %v22 = vsel %vm18, %v15, 0.0
  %23 = vadd.xlane.f32.xlu0 %v22
  %v24 = vpop.xlane.xlu0 %23
  %v25 = vrcp.pop 32.0
  %v26 = vmul.f32 32.0, %v25
  %v27 = vsub.f32 1.0, %v26
  %v28 = vmul.f32 %v25, %v27
  %v29 = vadd.f32 %v25, %v28
  %vm30 = vweird.f32 %v25
  %v31 = vsel %vm30, %v25, %v29
  %v32 = vmul.f32 %v21, %v31
  %v33 = vmul.f32 %v24, %v31
  %v34 = vsub.f32 %v14, %v32
  %v35 = vsub.f32 %v15, %v33
  %v36 = vmul.f32 %v34, %v34
  %v37 = vmul.f32 %v35, %v35
  %v38 = vsel %vm18, %v36, 0.0
  %39 = vadd.xlane.f32.xlu0 %v38
  %v40 = vpop.xlane.xlu0 %39
  %v41 = vsel %vm18, %v37, 0.0
  %42 = vadd.xlane.f32.xlu0 %v41
  %v43 = vpop.xlane.xlu0 %42
  %v44 = vmul.f32 %v40, %v31
  %v45 = vmul.f32 %v43, %v31
  %v46 = vadd.f32 %v44, 1e-12
  %v47 = vadd.f32 %v45, 1e-12
  %v48 = vrsqrt.pop %v46
  %v49 = vmul.f32 %v48, %v46
  %v50 = vmul.f32 %v49, %v48
  %v51 = vmul.f32 0.5, %v50
  %v52 = vsub.f32 1.5, %v51
  %v53 = vmul.f32 %v48, %v52
  %vm54 = vweird.f32 %v46
  %vm55 = vweird.f32 %v48
  %vm56 = vmor %vm54, %vm55
  %v57 = vsel %vm56, %v48, %v53
  %v58 = vrsqrt.pop %v47
  %v59 = vmul.f32 %v58, %v47
  %v60 = vmul.f32 %v59, %v58
  %v61 = vmul.f32 0.5, %v60
  %v62 = vsub.f32 1.5, %v61
  %v63 = vmul.f32 %v58, %v62
  %vm64 = vweird.f32 %v47
  %vm65 = vweird.f32 %v58
  %vm66 = vmor %vm64, %vm65
  %v67 = vsel %vm66, %v58, %v63
  %v68 = vmul.f32 %v34, %v57
  %v69 = vmul.f32 %v35, %v67
  %v71 = vperm.slane %v16, 0
  %v73 = vmul.f32 %v68, %v71
  %v74 = vmul.f32 %v69, %v71
  %v76 = vperm.slane %v17, 0
  %v78 = vadd.f32 %v73, %v76
  %v79 = vadd.f32 %v74, %v76
  %80 = vst.msk [vmem:[%s3] sm:$0xff] %vm18, %v78
  %81 = vst.msk [vmem:[%s3 + $0x8] sm:$0xff] %vm18, %v79
  // Predicated region
  $region14: #{bert_forward.3} parent=0 // pred_check
    _
  $region15: #{bert_forward.3} parent=0 // pred_check_branch
    %83 = sbr.rel (0) target = $region17
  $region16: #{bert_forward.3} parent=0 // pred_region
    _
  $region17: #{bert_forward.3} parent=0 // pred_fallthru
    _
  // Predicated region
  $region18: #{bert_forward.3} parent=0 // pred_check
    _
  $region19: #{bert_forward.3} parent=0 // pred_check_branch
    %85 = sbr.rel (0) target = $region21
  $region20: #{bert_forward.3} parent=0 // pred_region
    _
  $region21: #{bert_forward.3} parent=0 // pred_fallthru
    _

// kernel: bert_forward.5
$region0: #{bert_forward.5}
  #allocation0 [shape = 'u32[]', space=smem, size = 0x4, offset = 0x4, fixed_abs, tag = 'smem constant byte address 0x4 - core index']
  #allocation1 [shape = 'u32[72,128]{1,0:T(1,128)}', space=vmem, size = 0x9000, scoped, tag = 'internal scratch']
  %s0 = inlined_call_operand.vmem [shape: f32[2,32], index: 0, kind: input, shape index: {}]
  %s1 = inlined_call_operand.vmem [shape: f32[32,32], index: 1, kind: input, shape index: {}]
  %s2 = inlined_call_operand.vmem [shape: f32[1,32], index: 2, kind: input, shape index: {}]
  %s3 = inlined_call_operand.hbm [shape: f32[2,32], index: 3, kind: output, shape index: {}]
  %s4 = sld [smem:[#allocation0]]
  $region22: #{bert_forward.5} parent=0
    _
  %s6 = ssub.s32 1, %s4
  %s7 = scalar_select 0, %s6, %s4
  $region1: #{bert_forward.5} parent=0
    #allocation2 [shape = 'u8[1024]{0}', space=vmem, size = 0x400, scoped, tag = 'output window, operand 0, single buffered']
    #allocation3 [shape = 's32[1]{0}', space=sflag, size = 0x4, scoped, tag = 'scoped memory for bert_forward.5']
    %8 = vsyncpa [#allocation3], 0
    // Predicated region
    $region2: #{bert_forward.5} parent=1 // pred_check
      _
    $region3: #{bert_forward.5} parent=1 // pred_check_branch
      %10 = sbr.rel (0) target = $region5
    $region4: #{bert_forward.5} parent=1 // pred_region
      _
    $region5: #{bert_forward.5} parent=1 // pred_fallthru
      _
    // Predicated region
    $region6: #{bert_forward.5} parent=1 // pred_check
      _
    $region7: #{bert_forward.5} parent=1 // pred_check_branch
      %12 = sbr.rel (0) target = $region9
    $region8: #{bert_forward.5} parent=1 // pred_region
      _
    $region9: #{bert_forward.5} parent=1 // pred_fallthru
      _
    // Predicated region
    $region10: #{bert_forward.5} parent=1 // pred_check
      _
    $region11: #{bert_forward.5} parent=1 // pred_check_branch
      %14 = sbr.rel (0) target = $region13
    $region12: #{bert_forward.5} parent=1 // pred_region
      _
    $region13: #{bert_forward.5} parent=1 // pred_fallthru
      _
    %v15 = vld [vmem:[%s0] sm:$0x3]
    %v16 = vld [vmem:[%s1] sm:$0xff]
    %v17 = vld [vmem:[%s1 + $0x8] sm:$0xff]
    %v18 = vld [vmem:[%s1 + $0x10] sm:$0xff]
    %v19 = vld [vmem:[%s1 + $0x18] sm:$0xff]
    %v20 = vld [vmem:[%s2] sm:$0x1]
    %v22 = vperm.slane %v20, 0
    %vm24 = vcmask 261120
    %v26 = vsel %vm24, %v15, 0
    %28 = vmatpush.msra.mxu0 0.0
    %29 = vmatpush.msra.mxu0 0.0
    %30 = vmatpush.msra.mxu0 0.0
    %31 = vmatpush.msra.mxu0 0.0
    %32 = vmatpush.msra.mxu0 0.0
    %33 = vmatpush.msra.mxu0 0.0
    %34 = vmatpush.msra.mxu0 0.0
    %35 = vmatpush.msra.mxu0 0.0
    %36 = vmatpush.msra.mxu0 0.0
    %37 = vmatpush.msra.mxu0 0.0
    %38 = vmatpush.msra.mxu0 0.0
    %39 = vmatpush.msra.mxu0 0.0
    %40 = vmatpush.msra.mxu0 %v19
    %41 = vmatpush.msra.mxu0 %v18
    %42 = vmatpush.msra.mxu0 %v17
    %43 = vmatpush.msra.mxu0 %v16
    %44 = vmatmul.f32.gmra.mxu0 %v26
    %v45 = vpop.f32.mrf.mxu0
    %v46 = vadd.f32 %v22, %v45
    %47 = vdwg.mxu0
    %v48 = vtanh.pop %v46
    %vm49 = vcmask 254976
    %50 = vst.msk [vmem:[#allocation2] sm:$0x3] %vm49, %v48
    // Predicated region
    $region14: #{bert_forward.5} parent=1 // pred_check
      _
    $region15: #{bert_forward.5} parent=1 // pred_check_branch
      %52 = sbr.rel (0) target = $region17
    $region16: #{bert_forward.5} parent=1 // pred_region
      %54 = vsyncadd [#allocation3], 0
      %s56 = sshll.u32 [#allocation2], 4
      %s57 = int_to_ptr.vmem [resolvable:$true] %s56
      %s58 = sshll.u32 %s3, 4
      %s59 = int_to_ptr.hbm [resolvable:$true] %s58
      %61 = dma.vmem_to_hbm [thread:$0]  %s57, 32, %s59, [#allocation3]
    $region17: #{bert_forward.5} parent=1 // pred_fallthru
      _
    // Predicated region
    $region18: #{bert_forward.5} parent=1 // pred_check
      _
    $region19: #{bert_forward.5} parent=1 // pred_check_branch
      %63 = sbr.rel (0) target = $region21
    $region20: #{bert_forward.5} parent=1 // pred_region
      %65 = dma.done [#allocation3], 32
    $region21: #{bert_forward.5} parent=1 // pred_fallthru
      _
    %66 = vsyncpa [#allocation3], 1

// kernel: bert_forward.4
$region0: #{bert_forward.4}
  #allocation0 [shape = 'u32[]', space=smem, size = 0x4, offset = 0x4, fixed_abs, tag = 'smem constant byte address 0x4 - core index']
  #allocation1 [shape = 'u32[72,128]{1,0:T(1,128)}', space=vmem, size = 0x9000, scoped, tag = 'internal scratch']
  #allocation2 [shape = 'f32[16,32]{1,0:T(8,128)}', space=vmem, size = 0x2000, scoped, tag = 'scratch operand']
  %s0 = inlined_call_operand.vmem [shape: f32[16,32], index: 0, kind: input, shape index: {}]
  %s1 = inlined_call_operand.vmem [shape: f32[2,8], index: 1, kind: input, shape index: {}]
  %s2 = inlined_call_operand.vmem [shape: f32[2,32,96], index: 2, kind: input, shape index: {}]
  %s3 = inlined_call_operand.vmem [shape: f32[2,1,96], index: 3, kind: input, shape index: {}]
  %s4 = inlined_call_operand.vmem [shape: f32[2,32,32], index: 4, kind: input, shape index: {}]
  %s5 = inlined_call_operand.vmem [shape: f32[2,1,32], index: 5, kind: input, shape index: {}]
  %s6 = inlined_call_operand.vmem [shape: f32[2,1,32], index: 6, kind: input, shape index: {}]
  %s7 = inlined_call_operand.vmem [shape: f32[2,1,32], index: 7, kind: input, shape index: {}]
  %s8 = inlined_call_operand.vmem [shape: f32[2,32,64], index: 8, kind: input, shape index: {}]
  %s9 = inlined_call_operand.vmem [shape: f32[2,1,64], index: 9, kind: input, shape index: {}]
  %s10 = inlined_call_operand.vmem [shape: f32[2,64,32], index: 10, kind: input, shape index: {}]
  %s11 = inlined_call_operand.vmem [shape: f32[2,1,32], index: 11, kind: input, shape index: {}]
  %s12 = inlined_call_operand.vmem [shape: f32[2,1,32], index: 12, kind: input, shape index: {}]
  %s13 = inlined_call_operand.vmem [shape: f32[2,1,32], index: 13, kind: input, shape index: {}]
  %s14 = inlined_call_operand.vmem [shape: f32[2,16,32], index: 14, kind: output, shape index: {}]
  %s15 = sld [smem:[#allocation0]]
  $region93: #{bert_forward.4} parent=0
    _
  %s17 = ssub.s32 1, %s15
  %s18 = scalar_select 0, %s17, %s15
  loop: start=0, step=1, limit=4
  $region2: #{bert_forward.4} parent=0 // loop_pre_header
    _
  $region3: #{bert_forward.4} parent=0 // loop_header
    %s20 = sphi 0, %s24
    %p21 = scmp.ge.s32.totalorder %s20, 4
    %s28 = sphi 0, %s28
    %s30 = sphi 0, %s28
    %s31 = sphi 0, %s30
    %s45 = sphi 0, %s31
    %s49 = sphi 0, %s49
    %s51 = sphi 0, %s49
    %s52 = sphi 0, %s51
    %s66 = sphi 0, %s52
    %s72 = sphi 0, %s74
    %s75 = sphi 0, %s72
    %s76 = sphi 0, %s75
    %s92 = sphi 0, %s76
    %s98 = sphi 0, %s100
    %s101 = sphi 0, %s98
    %s102 = sphi 0, %s101
    %s118 = sphi 0, %s102
    %s124 = sphi 0, %s126
    %s127 = sphi 0, %s124
    %s128 = sphi 0, %s127
    %s144 = sphi 0, %s128
    %s150 = sphi 0, %s152
    %s153 = sphi 0, %s150
    %s154 = sphi 0, %s153
    %s170 = sphi 0, %s154
    %s176 = sphi 0, %s178
    %s179 = sphi 0, %s176
    %s180 = sphi 0, %s179
    %s196 = sphi 0, %s180
    %s202 = sphi 0, %s204
    %s205 = sphi 0, %s202
    %s206 = sphi 0, %s205
    %s222 = sphi 0, %s206
    %s228 = sphi 0, %s230
    %s231 = sphi 0, %s228
    %s232 = sphi 0, %s231
    %s248 = sphi 0, %s232
    %s254 = sphi 0, %s256
    %s257 = sphi 0, %s254
    %s258 = sphi 0, %s257
    %s274 = sphi 0, %s258
    %s280 = sphi 0, %s282
    %s283 = sphi 0, %s280
    %s284 = sphi 0, %s283
    %s300 = sphi 0, %s284
    %s306 = sphi 0, %s308
    %s309 = sphi 0, %s306
    %s310 = sphi 0, %s309
    %s326 = sphi 0, %s310
    %s332 = sphi 0, %s334
    %s335 = sphi 0, %s332
    %s336 = sphi 0, %s335
    %s352 = sphi 0, %s336
    %s358 = sphi 0, %s360
    %s361 = sphi 0, %s358
    %s362 = sphi 0, %s361
    %s378 = sphi 0, %s362
    %s384 = sphi 0, %s386
    %s387 = sphi 0, %s384
    %s388 = sphi 0, %s387
    %s404 = sphi 0, %s388
  $region4: #{bert_forward.4} parent=0 // loop_header_branch
    %23 = sbr.rel (%p21) target = $region8
  $region5: #{bert_forward.4} parent=0 // loop_body
    %s25 = ssub.s32 %s20, 1
    %s26 = ssub.s32 %s20, 2
    %s27 = sadd.s32 %s20, 1
    %s29 = sadd.s32 %s28, 1
    %p32 = scmp.eq.s32.totalorder %s20, 1
    %p33 = scmp.ne.s32.totalorder %s28, %s30
    %p34 = scmp.eq.s32.totalorder %s20, 0
    %p35 = por %p33, %p34
    %p36 = scmp.ne.s32.totalorder %s28, %s30
    %p37 = scmp.eq.s32.totalorder %s25, 1
    %p38 = por %p36, %p37
    %p39 = scmp.ne.s32.totalorder %s30, %s31
    %p40 = scmp.eq.s32.totalorder %s25, 0
    %p41 = por %p39, %p40
    %p42 = scmp.ne.s32.totalorder %s30, %s31
    %p43 = scmp.eq.s32.totalorder %s26, 1
    %p44 = por %p42, %p43
    %p46 = scmp.ne.s32.totalorder %s31, %s45
    %p47 = scmp.eq.s32.totalorder %s26, 0
    %p48 = por %p46, %p47
    %s50 = sadd.s32 %s49, 1
    %p53 = scmp.eq.s32.totalorder %s20, 1
    %p54 = scmp.ne.s32.totalorder %s49, %s51
    %p55 = scmp.eq.s32.totalorder %s20, 0
    %p56 = por %p54, %p55
    %p57 = scmp.ne.s32.totalorder %s49, %s51
    %p58 = scmp.eq.s32.totalorder %s25, 1
    %p59 = por %p57, %p58
    %p60 = scmp.ne.s32.totalorder %s51, %s52
    %p61 = scmp.eq.s32.totalorder %s25, 0
    %p62 = por %p60, %p61
    %p63 = scmp.ne.s32.totalorder %s51, %s52
    %p64 = scmp.eq.s32.totalorder %s26, 1
    %p65 = por %p63, %p64
    %p67 = scmp.ne.s32.totalorder %s52, %s66
    %p68 = scmp.eq.s32.totalorder %s26, 0
    %p69 = por %p67, %p68
    %s70 = ssub.s32 %s20, %s27
    %p71 = scmp.eq.s32.totalorder %s70, 0
    %s73 = sadd.s32 %s72, 1
    %s74 = scalar_select %p71, %s72, %s73
    %p77 = pneg %p71
    %p78 = scmp.eq.s32.totalorder %s20, 1
    %p79 = por %p77, %p78
    %p80 = scmp.ne.s32.totalorder %s72, %s75
    %p81 = scmp.eq.s32.totalorder %s20, 0
    %p82 = por %p80, %p81
    %p83 = scmp.ne.s32.totalorder %s72, %s75
    %p84 = scmp.eq.s32.totalorder %s25, 1
    %p85 = por %p83, %p84
    %p86 = scmp.ne.s32.totalorder %s75, %s76
    %p87 = scmp.eq.s32.totalorder %s25, 0
    %p88 = por %p86, %p87
    %p89 = scmp.ne.s32.totalorder %s75, %s76
    %p90 = scmp.eq.s32.totalorder %s26, 1
    %p91 = por %p89, %p90
    %p93 = scmp.ne.s32.totalorder %s76, %s92
    %p94 = scmp.eq.s32.totalorder %s26, 0
    %p95 = por %p93, %p94
    %s96 = ssub.s32 %s20, %s27
    %p97 = scmp.eq.s32.totalorder %s96, 0
    %s99 = sadd.s32 %s98, 1
    %s100 = scalar_select %p97, %s98, %s99
    %p103 = pneg %p97
    %p104 = scmp.eq.s32.totalorder %s20, 1
    %p105 = por %p103, %p104
    %p106 = scmp.ne.s32.totalorder %s98, %s101
    %p107 = scmp.eq.s32.totalorder %s20, 0
    %p108 = por %p106, %p107
    %p109 = scmp.ne.s32.totalorder %s98, %s101
    %p110 = scmp.eq.s32.totalorder %s25, 1
    %p111 = por %p109, %p110
    %p112 = scmp.ne.s32.totalorder %s101, %s102
    %p113 = scmp.eq.s32.totalorder %s25, 0
    %p114 = por %p112, %p113
    %p115 = scmp.ne.s32.totalorder %s101, %s102
    %p116 = scmp.eq.s32.totalorder %s26, 1
    %p117 = por %p115, %p116
    %p119 = scmp.ne.s32.totalorder %s102, %s118
    %p120 = scmp.eq.s32.totalorder %s26, 0
    %p121 = por %p119, %p120
    %s122 = ssub.s32 %s20, %s27
    %p123 = scmp.eq.s32.totalorder %s122, 0
    %s125 = sadd.s32 %s124, 1
    %s126 = scalar_select %p123, %s124, %s125
    %p129 = pneg %p123
    %p130 = scmp.eq.s32.totalorder %s20, 1
    %p131 = por %p129, %p130
    %p132 = scmp.ne.s32.totalorder %s124, %s127
    %p133 = scmp.eq.s32.totalorder %s20, 0
    %p134 = por %p132, %p133
    %p135 = scmp.ne.s32.totalorder %s124, %s127
    %p136 = scmp.eq.s32.totalorder %s25, 1
    %p137 = por %p135, %p136
    %p138 = scmp.ne.s32.totalorder %s127, %s128
    %p139 = scmp.eq.s32.totalorder %s25, 0
    %p140 = por %p138, %p139
    %p141 = scmp.ne.s32.totalorder %s127, %s128
    %p142 = scmp.eq.s32.totalorder %s26, 1
    %p143 = por %p141, %p142
    %p145 = scmp.ne.s32.totalorder %s128, %s144
    %p146 = scmp.eq.s32.totalorder %s26, 0
    %p147 = por %p145, %p146
    %s148 = ssub.s32 %s20, %s27
    %p149 = scmp.eq.s32.totalorder %s148, 0
    %s151 = sadd.s32 %s150, 1
    %s152 = scalar_select %p149, %s150, %s151
    %p155 = pneg %p149
    %p156 = scmp.eq.s32.totalorder %s20, 1
    %p157 = por %p155, %p156
    %p158 = scmp.ne.s32.totalorder %s150, %s153
    %p159 = scmp.eq.s32.totalorder %s20, 0
    %p160 = por %p158, %p159
    %p161 = scmp.ne.s32.totalorder %s150, %s153
    %p162 = scmp.eq.s32.totalorder %s25, 1
    %p163 = por %p161, %p162
    %p164 = scmp.ne.s32.totalorder %s153, %s154
    %p165 = scmp.eq.s32.totalorder %s25, 0
    %p166 = por %p164, %p165
    %p167 = scmp.ne.s32.totalorder %s153, %s154
    %p168 = scmp.eq.s32.totalorder %s26, 1
    %p169 = por %p167, %p168
    %p171 = scmp.ne.s32.totalorder %s154, %s170
    %p172 = scmp.eq.s32.totalorder %s26, 0
    %p173 = por %p171, %p172
    %s174 = ssub.s32 %s20, %s27
    %p175 = scmp.eq.s32.totalorder %s174, 0
    %s177 = sadd.s32 %s176, 1
    %s178 = scalar_select %p175, %s176, %s177
    %p181 = pneg %p175
    %p182 = scmp.eq.s32.totalorder %s20, 1
    %p183 = por %p181, %p182
    %p184 = scmp.ne.s32.totalorder %s176, %s179
    %p185 = scmp.eq.s32.totalorder %s20, 0
    %p186 = por %p184, %p185
    %p187 = scmp.ne.s32.totalorder %s176, %s179
    %p188 = scmp.eq.s32.totalorder %s25, 1
    %p189 = por %p187, %p188
    %p190 = scmp.ne.s32.totalorder %s179, %s180
    %p191 = scmp.eq.s32.totalorder %s25, 0
    %p192 = por %p190, %p191
    %p193 = scmp.ne.s32.totalorder %s179, %s180
    %p194 = scmp.eq.s32.totalorder %s26, 1
    %p195 = por %p193, %p194
    %p197 = scmp.ne.s32.totalorder %s180, %s196
    %p198 = scmp.eq.s32.totalorder %s26, 0
    %p199 = por %p197, %p198
    %s200 = ssub.s32 %s20, %s27
    %p201 = scmp.eq.s32.totalorder %s200, 0
    %s203 = sadd.s32 %s202, 1
    %s204 = scalar_select %p201, %s202, %s203
    %p207 = pneg %p201
    %p208 = scmp.eq.s32.totalorder %s20, 1
    %p209 = por %p207, %p208
    %p210 = scmp.ne.s32.totalorder %s202, %s205
    %p211 = scmp.eq.s32.totalorder %s20, 0
    %p212 = por %p210, %p211
    %p213 = scmp.ne.s32.totalorder %s202, %s205
    %p214 = scmp.eq.s32.totalorder %s25, 1
    %p215 = por %p213, %p214
    %p216 = scmp.ne.s32.totalorder %s205, %s206
    %p217 = scmp.eq.s32.totalorder %s25, 0
    %p218 = por %p216, %p217
    %p219 = scmp.ne.s32.totalorder %s205, %s206
    %p220 = scmp.eq.s32.totalorder %s26, 1
    %p221 = por %p219, %p220
    %p223 = scmp.ne.s32.totalorder %s206, %s222
    %p224 = scmp.eq.s32.totalorder %s26, 0
    %p225 = por %p223, %p224
    %s226 = ssub.s32 %s20, %s27
    %p227 = scmp.eq.s32.totalorder %s226, 0
    %s229 = sadd.s32 %s228, 1
    %s230 = scalar_select %p227, %s228, %s229
    %p233 = pneg %p227
    %p234 = scmp.eq.s32.totalorder %s20, 1
    %p235 = por %p233, %p234
    %p236 = scmp.ne.s32.totalorder %s228, %s231
    %p237 = scmp.eq.s32.totalorder %s20, 0
    %p238 = por %p236, %p237
    %p239 = scmp.ne.s32.totalorder %s228, %s231
    %p240 = scmp.eq.s32.totalorder %s25, 1
    %p241 = por %p239, %p240
    %p242 = scmp.ne.s32.totalorder %s231, %s232
    %p243 = scmp.eq.s32.totalorder %s25, 0
    %p244 = por %p242, %p243
    %p245 = scmp.ne.s32.totalorder %s231, %s232
    %p246 = scmp.eq.s32.totalorder %s26, 1
    %p247 = por %p245, %p246
    %p249 = scmp.ne.s32.totalorder %s232, %s248
    %p250 = scmp.eq.s32.totalorder %s26, 0
    %p251 = por %p249, %p250
    %s252 = ssub.s32 %s20, %s27
    %p253 = scmp.eq.s32.totalorder %s252, 0
    %s255 = sadd.s32 %s254, 1
    %s256 = scalar_select %p253, %s254, %s255
    %p259 = pneg %p253
    %p260 = scmp.eq.s32.totalorder %s20, 1
    %p261 = por %p259, %p260
    %p262 = scmp.ne.s32.totalorder %s254, %s257
    %p263 = scmp.eq.s32.totalorder %s20, 0
    %p264 = por %p262, %p263
    %p265 = scmp.ne.s32.totalorder %s254, %s257
    %p266 = scmp.eq.s32.totalorder %s25, 1
    %p267 = por %p265, %p266
    %p268 = scmp.ne.s32.totalorder %s257, %s258
    %p269 = scmp.eq.s32.totalorder %s25, 0
    %p270 = por %p268, %p269
    %p271 = scmp.ne.s32.totalorder %s257, %s258
    %p272 = scmp.eq.s32.totalorder %s26, 1
    %p273 = por %p271, %p272
    %p275 = scmp.ne.s32.totalorder %s258, %s274
    %p276 = scmp.eq.s32.totalorder %s26, 0
    %p277 = por %p275, %p276
    %s278 = ssub.s32 %s20, %s27
    %p279 = scmp.eq.s32.totalorder %s278, 0
    %s281 = sadd.s32 %s280, 1
    %s282 = scalar_select %p279, %s280, %s281
    %p285 = pneg %p279
    %p286 = scmp.eq.s32.totalorder %s20, 1
    %p287 = por %p285, %p286
    %p288 = scmp.ne.s32.totalorder %s280, %s283
    %p289 = scmp.eq.s32.totalorder %s20, 0
    %p290 = por %p288, %p289
    %p291 = scmp.ne.s32.totalorder %s280, %s283
    %p292 = scmp.eq.s32.totalorder %s25, 1
    %p293 = por %p291, %p292
    %p294 = scmp.ne.s32.totalorder %s283, %s284
    %p295 = scmp.eq.s32.totalorder %s25, 0
    %p296 = por %p294, %p295
    %p297 = scmp.ne.s32.totalorder %s283, %s284
    %p298 = scmp.eq.s32.totalorder %s26, 1
    %p299 = por %p297, %p298
    %p301 = scmp.ne.s32.totalorder %s284, %s300
    %p302 = scmp.eq.s32.totalorder %s26, 0
    %p303 = por %p301, %p302
    %s304 = ssub.s32 %s20, %s27
    %p305 = scmp.eq.s32.totalorder %s304, 0
    %s307 = sadd.s32 %s306, 1
    %s308 = scalar_select %p305, %s306, %s307
    %p311 = pneg %p305
    %p312 = scmp.eq.s32.totalorder %s20, 1
    %p313 = por %p311, %p312
    %p314 = scmp.ne.s32.totalorder %s306, %s309
    %p315 = scmp.eq.s32.totalorder %s20, 0
    %p316 = por %p314, %p315
    %p317 = scmp.ne.s32.totalorder %s306, %s309
    %p318 = scmp.eq.s32.totalorder %s25, 1
    %p319 = por %p317, %p318
    %p320 = scmp.ne.s32.totalorder %s309, %s310
    %p321 = scmp.eq.s32.totalorder %s25, 0
    %p322 = por %p320, %p321
    %p323 = scmp.ne.s32.totalorder %s309, %s310
    %p324 = scmp.eq.s32.totalorder %s26, 1
    %p325 = por %p323, %p324
    %p327 = scmp.ne.s32.totalorder %s310, %s326
    %p328 = scmp.eq.s32.totalorder %s26, 0
    %p329 = por %p327, %p328
    %s330 = ssub.s32 %s20, %s27
    %p331 = scmp.eq.s32.totalorder %s330, 0
    %s333 = sadd.s32 %s332, 1
    %s334 = scalar_select %p331, %s332, %s333
    %p337 = pneg %p331
    %p338 = scmp.eq.s32.totalorder %s20, 1
    %p339 = por %p337, %p338
    %p340 = scmp.ne.s32.totalorder %s332, %s335
    %p341 = scmp.eq.s32.totalorder %s20, 0
    %p342 = por %p340, %p341
    %p343 = scmp.ne.s32.totalorder %s332, %s335
    %p344 = scmp.eq.s32.totalorder %s25, 1
    %p345 = por %p343, %p344
    %p346 = scmp.ne.s32.totalorder %s335, %s336
    %p347 = scmp.eq.s32.totalorder %s25, 0
    %p348 = por %p346, %p347
    %p349 = scmp.ne.s32.totalorder %s335, %s336
    %p350 = scmp.eq.s32.totalorder %s26, 1
    %p351 = por %p349, %p350
    %p353 = scmp.ne.s32.totalorder %s336, %s352
    %p354 = scmp.eq.s32.totalorder %s26, 0
    %p355 = por %p353, %p354
    %s356 = ssub.s32 %s20, %s27
    %p357 = scmp.eq.s32.totalorder %s356, 0
    %s359 = sadd.s32 %s358, 1
    %s360 = scalar_select %p357, %s358, %s359
    %p363 = pneg %p357
    %p364 = scmp.eq.s32.totalorder %s20, 1
    %p365 = por %p363, %p364
    %p366 = scmp.ne.s32.totalorder %s358, %s361
    %p367 = scmp.eq.s32.totalorder %s20, 0
    %p368 = por %p366, %p367
    %p369 = scmp.ne.s32.totalorder %s358, %s361
    %p370 = scmp.eq.s32.totalorder %s25, 1
    %p371 = por %p369, %p370
    %p372 = scmp.ne.s32.totalorder %s361, %s362
    %p373 = scmp.eq.s32.totalorder %s25, 0
    %p374 = por %p372, %p373
    %p375 = scmp.ne.s32.totalorder %s361, %s362
    %p376 = scmp.eq.s32.totalorder %s26, 1
    %p377 = por %p375, %p376
    %p379 = scmp.ne.s32.totalorder %s362, %s378
    %p380 = scmp.eq.s32.totalorder %s26, 0
    %p381 = por %p379, %p380
    %s382 = ssub.s32 %s20, %s27
    %p383 = scmp.eq.s32.totalorder %s382, 0
    %s385 = sadd.s32 %s384, 1
    %s386 = scalar_select %p383, %s384, %s385
    %p389 = pneg %p383
    %p390 = scmp.eq.s32.totalorder %s20, 1
    %p391 = por %p389, %p390
    %p392 = scmp.ne.s32.totalorder %s384, %s387
    %p393 = scmp.eq.s32.totalorder %s20, 0
    %p394 = por %p392, %p393
    %p395 = scmp.ne.s32.totalorder %s384, %s387
    %p396 = scmp.eq.s32.totalorder %s25, 1
    %p397 = por %p395, %p396
    %p398 = scmp.ne.s32.totalorder %s387, %s388
    %p399 = scmp.eq.s32.totalorder %s25, 0
    %p400 = por %p398, %p399
    %p401 = scmp.ne.s32.totalorder %s387, %s388
    %p402 = scmp.eq.s32.totalorder %s26, 1
    %p403 = por %p401, %p402
    %p405 = scmp.ne.s32.totalorder %s388, %s404
    %p406 = scmp.eq.s32.totalorder %s26, 0
    %p407 = por %p405, %p406
    %p408 = scmp.le.s32.totalorder 1, %s20
    %p409 = scmp.lt.s32.totalorder %s20, 3
    %p410 = pnand %p408, %p409
    %p411 = pneg %p410
    // Predicated region
    $region9: #{bert_forward.4} parent=5 // pred_check
      _
    $region10: #{bert_forward.4} parent=5 // pred_check_branch
      %413 = sbr.rel (%p410) target = $region12
    $region11: #{bert_forward.4} parent=5 // pred_region
      %s414 = ssub.s32 %s20, 1
      // Predicated region
      $region13: #{bert_forward.4} parent=11 // pred_check
        %p415 = pneg %p41
      $region14: #{bert_forward.4} parent=11 // pred_check_branch
        %417 = sbr.rel (%p415) target = $region16
      $region15: #{bert_forward.4} parent=11 // pred_region
        _
      $region16: #{bert_forward.4} parent=11 // pred_fallthru
        _
      // Predicated region
      $region17: #{bert_forward.4} parent=11 // pred_check
        %p418 = pneg %p62
      $region18: #{bert_forward.4} parent=11 // pred_check_branch
        %420 = sbr.rel (%p418) target = $region20
      $region19: #{bert_forward.4} parent=11 // pred_region
        _
      $region20: #{bert_forward.4} parent=11 // pred_fallthru
        _
    $region12: #{bert_forward.4} parent=5 // pred_fallthru
      _
    %p421 = scmp.lt.s32.totalorder %s20, 2
    // Predicated region
    $region21: #{bert_forward.4} parent=5 // pred_check
      %p422 = pneg %p421
    $region22: #{bert_forward.4} parent=5 // pred_check_branch
      %424 = sbr.rel (%p422) target = $region24
    $region23: #{bert_forward.4} parent=5 // pred_region
      // Predicated region
      $region25: #{bert_forward.4} parent=23 // pred_check
        %p425 = pneg %p82
      $region26: #{bert_forward.4} parent=23 // pred_check_branch
        %427 = sbr.rel (%p425) target = $region28
      $region27: #{bert_forward.4} parent=23 // pred_region
        %p428 = scmp.lt.s32.totalorder %s20, 1
        %s429 = scalar_select %p428, %s20, 1
        %s430 = smul.addr %s429, 4
        %s431 = smul.addr %s430, 8
        %s432 = scalar_lea.vmem %s2, %s431
      $region28: #{bert_forward.4} parent=23 // pred_fallthru
        _
      // Predicated region
      $region29: #{bert_forward.4} parent=23 // pred_check
        %p433 = pneg %p108
      $region30: #{bert_forward.4} parent=23 // pred_check_branch
        %435 = sbr.rel (%p433) target = $region32
      $region31: #{bert_forward.4} parent=23 // pred_region
        %p436 = scmp.lt.s32.totalorder %s20, 1
        %s437 = scalar_select %p436, %s20, 1
        %s438 = scalar_lea.vmem %s3, %s437
      $region32: #{bert_forward.4} parent=23 // pred_fallthru
        _
      // Predicated region
      $region33: #{bert_forward.4} parent=23 // pred_check
        %p439 = pneg %p134
      $region34: #{bert_forward.4} parent=23 // pred_check_branch
        %441 = sbr.rel (%p439) target = $region36
      $region35: #{bert_forward.4} parent=23 // pred_region
        %p442 = scmp.lt.s32.totalorder %s20, 1
        %s443 = scalar_select %p442, %s20, 1
        %s444 = smul.addr %s443, 4
        %s445 = smul.addr %s444, 8
        %s446 = scalar_lea.vmem %s4, %s445
      $region36: #{bert_forward.4} parent=23 // pred_fallthru
        _
      // Predicated region
      $region37: #{bert_forward.4} parent=23 // pred_check
        %p447 = pneg %p160
      $region38: #{bert_forward.4} parent=23 // pred_check_branch
        %449 = sbr.rel (%p447) target = $region40
      $region39: #{bert_forward.4} parent=23 // pred_region
        %p450 = scmp.lt.s32.totalorder %s20, 1
        %s451 = scalar_select %p450, %s20, 1
        %s452 = scalar_lea.vmem %s5, %s451
      $region40: #{bert_forward.4} parent=23 // pred_fallthru
        _
      // Predicated region
      $region41: #{bert_forward.4} parent=23 // pred_check
        %p453 = pneg %p186
      $region42: #{bert_forward.4} parent=23 // pred_check_branch
        %455 = sbr.rel (%p453) target = $region44
      $region43: #{bert_forward.4} parent=23 // pred_region
        %p456 = scmp.lt.s32.totalorder %s20, 1
        %s457 = scalar_select %p456, %s20, 1
        %s458 = scalar_lea.vmem %s6, %s457
      $region44: #{bert_forward.4} parent=23 // pred_fallthru
        _
      // Predicated region
      $region45: #{bert_forward.4} parent=23 // pred_check
        %p459 = pneg %p212
      $region46: #{bert_forward.4} parent=23 // pred_check_branch
        %461 = sbr.rel (%p459) target = $region48
      $region47: #{bert_forward.4} parent=23 // pred_region
        %p462 = scmp.lt.s32.totalorder %s20, 1
        %s463 = scalar_select %p462, %s20, 1
        %s464 = scalar_lea.vmem %s7, %s463
      $region48: #{bert_forward.4} parent=23 // pred_fallthru
        _
      // Predicated region
      $region49: #{bert_forward.4} parent=23 // pred_check
        %p465 = pneg %p238
      $region50: #{bert_forward.4} parent=23 // pred_check_branch
        %467 = sbr.rel (%p465) target = $region52
      $region51: #{bert_forward.4} parent=23 // pred_region
        %p468 = scmp.lt.s32.totalorder %s20, 1
        %s469 = scalar_select %p468, %s20, 1
        %s470 = smul.addr %s469, 4
        %s471 = smul.addr %s470, 8
        %s472 = scalar_lea.vmem %s8, %s471
      $region52: #{bert_forward.4} parent=23 // pred_fallthru
        _
      // Predicated region
      $region53: #{bert_forward.4} parent=23 // pred_check
        %p473 = pneg %p264
      $region54: #{bert_forward.4} parent=23 // pred_check_branch
        %475 = sbr.rel (%p473) target = $region56
      $region55: #{bert_forward.4} parent=23 // pred_region
        %p476 = scmp.lt.s32.totalorder %s20, 1
        %s477 = scalar_select %p476, %s20, 1
        %s478 = scalar_lea.vmem %s9, %s477
      $region56: #{bert_forward.4} parent=23 // pred_fallthru
        _
      // Predicated region
      $region57: #{bert_forward.4} parent=23 // pred_check
        %p479 = pneg %p290
      $region58: #{bert_forward.4} parent=23 // pred_check_branch
        %481 = sbr.rel (%p479) target = $region60
      $region59: #{bert_forward.4} parent=23 // pred_region
        %p482 = scmp.lt.s32.totalorder %s20, 1
        %s483 = scalar_select %p482, %s20, 1
        %s484 = smul.addr %s483, 8
        %s485 = smul.addr %s484, 8
        %s486 = scalar_lea.vmem %s10, %s485
      $region60: #{bert_forward.4} parent=23 // pred_fallthru
        _
      // Predicated region
      $region61: #{bert_forward.4} parent=23 // pred_check
        %p487 = pneg %p316
      $region62: #{bert_forward.4} parent=23 // pred_check_branch
        %489 = sbr.rel (%p487) target = $region64
      $region63: #{bert_forward.4} parent=23 // pred_region
        %p490 = scmp.lt.s32.totalorder %s20, 1
        %s491 = scalar_select %p490, %s20, 1
        %s492 = scalar_lea.vmem %s11, %s491
      $region64: #{bert_forward.4} parent=23 // pred_fallthru
        _
      // Predicated region
      $region65: #{bert_forward.4} parent=23 // pred_check
        %p493 = pneg %p342
      $region66: #{bert_forward.4} parent=23 // pred_check_branch
        %495 = sbr.rel (%p493) target = $region68
      $region67: #{bert_forward.4} parent=23 // pred_region
        %p496 = scmp.lt.s32.totalorder %s20, 1
        %s497 = scalar_select %p496, %s20, 1
        %s498 = scalar_lea.vmem %s12, %s497
      $region68: #{bert_forward.4} parent=23 // pred_fallthru
        _
      // Predicated region
      $region69: #{bert_forward.4} parent=23 // pred_check
        %p499 = pneg %p368
      $region70: #{bert_forward.4} parent=23 // pred_check_branch
        %501 = sbr.rel (%p499) target = $region72
      $region71: #{bert_forward.4} parent=23 // pred_region
        %p502 = scmp.lt.s32.totalorder %s20, 1
        %s503 = scalar_select %p502, %s20, 1
        %s504 = scalar_lea.vmem %s13, %s503
      $region72: #{bert_forward.4} parent=23 // pred_fallthru
        _
    $region24: #{bert_forward.4} parent=5 // pred_fallthru
      _
    %p505 = scmp.le.s32.totalorder 1, %s20
    %p506 = scmp.lt.s32.totalorder %s20, 3
    %p507 = pnand %p505, %p506
    %p508 = pneg %p507
    // Predicated region
    $region73: #{bert_forward.4} parent=5 // pred_check
      _
    $region74: #{bert_forward.4} parent=5 // pred_check_branch
      %510 = sbr.rel (%p507) target = $region76
    $region75: #{bert_forward.4} parent=5 // pred_region
      %s511 = ssub.s32 %s20, 1
      %p512 = pneg %p41
      %p513 = pneg %p38
      %p514 = pneg %p62
      %p515 = pneg %p59
      %p516 = scmp.lt.s32.totalorder %s25, 1
      %s517 = scalar_select %p516, %s25, 1
      %s518 = smul.addr %s517, 4
      %s519 = smul.addr %s518, 8
      %s520 = scalar_lea.vmem %s2, %s519
      %p521 = pneg %p88
      %p522 = pneg %p85
      %p523 = scmp.lt.s32.totalorder %s25, 1
      %s524 = scalar_select %p523, %s25, 1
      %s525 = scalar_lea.vmem %s3, %s524
      %p526 = pneg %p114
      %p527 = pneg %p111
      %p528 = scmp.lt.s32.totalorder %s25, 1
      %s529 = scalar_select %p528, %s25, 1
      %s530 = smul.addr %s529, 4
      %s531 = smul.addr %s530, 8
      %s532 = scalar_lea.vmem %s4, %s531
      %p533 = pneg %p140
      %p534 = pneg %p137
      %p535 = scmp.lt.s32.totalorder %s25, 1
      %s536 = scalar_select %p535, %s25, 1
      %s537 = scalar_lea.vmem %s5, %s536
      %p538 = pneg %p166
      %p539 = pneg %p163
      %p540 = scmp.lt.s32.totalorder %s25, 1
      %s541 = scalar_select %p540, %s25, 1
      %s542 = scalar_lea.vmem %s6, %s541
      %p543 = pneg %p192
      %p544 = pneg %p189
      %p545 = scmp.lt.s32.totalorder %s25, 1
      %s546 = scalar_select %p545, %s25, 1
      %s547 = scalar_lea.vmem %s7, %s546
      %p548 = pneg %p218
      %p549 = pneg %p215
      %p550 = scmp.lt.s32.totalorder %s25, 1
      %s551 = scalar_select %p550, %s25, 1
      %s552 = smul.addr %s551, 4
      %s553 = smul.addr %s552, 8
      %s554 = scalar_lea.vmem %s8, %s553
      %p555 = pneg %p244
      %p556 = pneg %p241
      %p557 = scmp.lt.s32.totalorder %s25, 1
      %s558 = scalar_select %p557, %s25, 1
      %s559 = scalar_lea.vmem %s9, %s558
      %p560 = pneg %p270
      %p561 = pneg %p267
      %p562 = scmp.lt.s32.totalorder %s25, 1
      %s563 = scalar_select %p562, %s25, 1
      %s564 = smul.addr %s563, 8
      %s565 = smul.addr %s564, 8
      %s566 = scalar_lea.vmem %s10, %s565
      %p567 = pneg %p296
      %p568 = pneg %p293
      %p569 = scmp.lt.s32.totalorder %s25, 1
      %s570 = scalar_select %p569, %s25, 1
      %s571 = scalar_lea.vmem %s11, %s570
      %p572 = pneg %p322
      %p573 = pneg %p319
      %p574 = scmp.lt.s32.totalorder %s25, 1
      %s575 = scalar_select %p574, %s25, 1
      %s576 = scalar_lea.vmem %s12, %s575
      %p577 = pneg %p348
      %p578 = pneg %p345
      %p579 = scmp.lt.s32.totalorder %s25, 1
      %s580 = scalar_select %p579, %s25, 1
      %s581 = scalar_lea.vmem %s13, %s580
      %p582 = pneg %p374
      %p583 = pneg %p371
      %p584 = pneg %p400
      %p585 = pneg %p397
      %p586 = scmp.lt.s32.totalorder %s25, 1
      %s587 = scalar_select %p586, %s25, 1
      %s588 = smul.addr %s587, 2
      %s589 = smul.addr %s588, 8
      %s590 = scalar_lea.vmem %s14, %s589
      %p591 = scmp.lt.s32.totalorder %s25, 1
      %s592 = scalar_select %p591, %s25, 1
      %s593 = smul.addr %s592, 4
      %s594 = smul.addr %s593, 8
      %s595 = scalar_lea.vmem %s2, %s594
      %p596 = scmp.lt.s32.totalorder %s25, 1
      %s597 = scalar_select %p596, %s25, 1
      %s598 = scalar_lea.vmem %s3, %s597
      %p599 = scmp.lt.s32.totalorder %s25, 1
      %s600 = scalar_select %p599, %s25, 1
      %s601 = smul.addr %s600, 4
      %s602 = smul.addr %s601, 8
      %s603 = scalar_lea.vmem %s4, %s602
      %p604 = scmp.lt.s32.totalorder %s25, 1
      %s605 = scalar_select %p604, %s25, 1
      %s606 = scalar_lea.vmem %s5, %s605
      %p607 = scmp.lt.s32.totalorder %s25, 1
      %s608 = scalar_select %p607, %s25, 1
      %s609 = scalar_lea.vmem %s6, %s608
      %p610 = scmp.lt.s32.totalorder %s25, 1
      %s611 = scalar_select %p610, %s25, 1
      %s612 = scalar_lea.vmem %s7, %s611
      %p613 = scmp.lt.s32.totalorder %s25, 1
      %s614 = scalar_select %p613, %s25, 1
      %s615 = smul.addr %s614, 4
      %s616 = smul.addr %s615, 8
      %s617 = scalar_lea.vmem %s8, %s616
      %p618 = scmp.lt.s32.totalorder %s25, 1
      %s619 = scalar_select %p618, %s25, 1
      %s620 = scalar_lea.vmem %s9, %s619
      %p621 = scmp.lt.s32.totalorder %s25, 1
      %s622 = scalar_select %p621, %s25, 1
      %s623 = smul.addr %s622, 8
      %s624 = smul.addr %s623, 8
      %s625 = scalar_lea.vmem %s10, %s624
      %p626 = scmp.lt.s32.totalorder %s25, 1
      %s627 = scalar_select %p626, %s25, 1
      %s628 = scalar_lea.vmem %s11, %s627
      %p629 = scmp.lt.s32.totalorder %s25, 1
      %s630 = scalar_select %p629, %s25, 1
      %s631 = scalar_lea.vmem %s12, %s630
      %p632 = scmp.lt.s32.totalorder %s25, 1
      %s633 = scalar_select %p632, %s25, 1
      %s634 = scalar_lea.vmem %s13, %s633
      %p635 = scmp.lt.s32.totalorder %s25, 1
      %s636 = scalar_select %p635, %s25, 1
      %s637 = smul.addr %s636, 2
      %s638 = smul.addr %s637, 8
      %s639 = scalar_lea.vmem %s14, %s638
      %p640 = scmp.eq.s32.totalorder %s25, 0
      // Predicated region
      $region77: #{bert_forward.4} parent=75 // pred_check
        %p641 = pneg %p640
      $region78: #{bert_forward.4} parent=75 // pred_check_branch
        %643 = sbr.rel (%p641) target = $region80
      $region79: #{bert_forward.4} parent=75 // pred_region
        %v644 = vld [vmem:[%s0] sm:$0xff]
        %v645 = vld [vmem:[%s0 + $0x8] sm:$0xff]
        %vm646 = vcmask 261120
        %647 = vst.msk [vmem:[#allocation2] sm:$0xff] %vm646, %v644
        %648 = vst.msk [vmem:[#allocation2 + $0x8] sm:$0xff] %vm646, %v645
      $region80: #{bert_forward.4} parent=75 // pred_fallthru
        _
      %v649 = vld [vmem:[#allocation2] sm:$0xff]
      %v650 = vld [vmem:[#allocation2 + $0x8] sm:$0xff]
      %v651 = vld [vmem:[%s595] sm:$0xff]
      %v652 = vld [vmem:[%s595 + $0x8] sm:$0xff]
      %v653 = vld [vmem:[%s595 + $0x10] sm:$0xff]
      %v654 = vld [vmem:[%s595 + $0x18] sm:$0xff]
      %v655 = vld [vmem:[%s598] sm:$0x1]
      %v657 = vperm.slane %v655, 0
      %vm659 = vcmask 261120
      %v661 = vsel %vm659, %v649, 0
      %v664 = vsel %vm659, %v650, 0
      %666 = vmatpush.msra.mxu0 0.0
      %667 = vmatpush.msra.mxu0 0.0
      %668 = vmatpush.msra.mxu0 0.0
      %669 = vmatpush.msra.mxu0 0.0
      %670 = vmatpush.msra.mxu0 0.0
      %671 = vmatpush.msra.mxu0 0.0
      %672 = vmatpush.msra.mxu0 0.0
      %673 = vmatpush.msra.mxu0 0.0
      %674 = vmatpush.msra.mxu0 0.0
      %675 = vmatpush.msra.mxu0 0.0
      %676 = vmatpush.msra.mxu0 0.0
      %677 = vmatpush.msra.mxu0 0.0
      %678 = vmatpush.msra.mxu0 %v654
      %679 = vmatpush.msra.mxu0 %v653
      %680 = vmatpush.msra.mxu0 %v652
      %681 = vmatpush.msra.mxu0 %v651
      %682 = vmatmul.f32.gmra.mxu0 %v661
      %v683 = vpop.f32.mrf.mxu0
      %v684 = vadd.f32 %v657, %v683
      %685 = vmatmul.f32.gmra.mxu0 %v664
      %v686 = vpop.f32.mrf.mxu0
      %v687 = vadd.f32 %v657, %v686
      %688 = vdwg.mxu0
      %v689 = vld [vmem:[%s1] sm:$0x3]
      %691 = vrot.lane.b32.xlu0 %v684, 96
      %v692 = vpop.permute.xlu0 %691
      %vm693 = vcmask 130048
      %v694 = vsel %vm693, %v684, 0
      %v696 = vsel %vm693, %v692, 0
      %698 = vmatpush.xpose.msra.mxu0 0.0
      %699 = vmatpush.xpose.msra.mxu0 0.0
      %700 = vmatpush.xpose.msra.mxu0 0.0
      %701 = vmatpush.xpose.msra.mxu0 0.0
      %702 = vmatpush.xpose.msra.mxu0 0.0
      %703 = vmatpush.xpose.msra.mxu0 0.0
      %704 = vmatpush.xpose.msra.mxu0 0.0
      %705 = vmatpush.xpose.msra.mxu0 0.0
      %706 = vmatpush.xpose.msra.mxu0 0.0
      %707 = vmatpush.xpose.msra.mxu0 0.0
      %708 = vmatpush.xpose.msra.mxu0 0.0
      %709 = vmatpush.xpose.msra.mxu0 0.0
      %710 = vmatpush.xpose.msra.mxu0 0.0
      %711 = vmatpush.xpose.msra.mxu0 0.0
      %712 = vmatpush.xpose.msra.mxu0 0.0
      %713 = vmatpush.xpose.msra.mxu0 %v696
      %714 = vmatmul.f32.gmra.mxu0 %v694
      %v715 = vpop.f32.mrf.mxu0
      %v716 = vadd.f32 0.0, %v715
      %717 = vdwg.mxu0
      %v718 = vmul.f32 %v716, 0.25
      %v719 = vperm.slane %v689, 0
      %v720 = vadd.f32 %v718, %v719
      %vm721 = vcmask 64512
      %v722 = vsel %vm721, %v720, -inf
      %723 = vmax.xlane.f32.xlu0 %v722
      %v724 = vpop.xlane.xlu0 %723
      %v725 = vsub.f32 %v720, %v724
      %v726 = vmul.f32 %v725, 1.442695
      %v727 = vpow.pop %v726
      %v728 = vsel %vm721, %v727, 0.0
      %729 = vadd.xlane.f32.xlu0 %v728
      %v730 = vpop.xlane.xlu0 %729
      %v731 = vrcp.pop %v730
      %v732 = vmul.f32 %v727, %v731
      %733 = vrot.lane.b32.xlu0 %v684, 64
      %v734 = vpop.permute.xlu0 %733
      %v737 = vsel %vm721, %v732, 0
      %739 = vmatpush.msra.mxu0 0.0
      %740 = vmatpush.msra.mxu0 0.0
      %741 = vmatpush.msra.mxu0 0.0
      %742 = vmatpush.msra.mxu0 0.0
      %743 = vmatpush.msra.mxu0 0.0
      %744 = vmatpush.msra.mxu0 0.0
      %745 = vmatpush.msra.mxu0 0.0
      %746 = vmatpush.msra.mxu0 0.0
      %747 = vmatpush.msra.mxu0 0.0
      %748 = vmatpush.msra.mxu0 0.0
      %749 = vmatpush.msra.mxu0 0.0
      %750 = vmatpush.msra.mxu0 0.0
      %751 = vmatpush.msra.mxu0 0.0
      %752 = vmatpush.msra.mxu0 0.0
      %753 = vmatpush.msra.mxu0 0.0
      %754 = vmatpush.msra.mxu0 %v734
      %755 = vmatmul.f32.gmra.mxu0 %v737
      %v756 = vpop.f32.mrf.mxu0
      %v757 = vadd.f32 0.0, %v756
      %758 = vdwg.mxu0
      %759 = vrot.lane.b32.xlu0 %v684, 112
      %v760 = vpop.permute.xlu0 %759
      %761 = vrot.lane.b32.xlu0 %v684, 80
      %v762 = vpop.permute.xlu0 %761
      %v763 = vsel %vm693, %v760, 0
      %v765 = vsel %vm693, %v762, 0
      %767 = vmatpush.xpose.msra.mxu0 0.0
      %768 = vmatpush.xpose.msra.mxu0 0.0
      %769 = vmatpush.xpose.msra.mxu0 0.0
      %770 = vmatpush.xpose.msra.mxu0 0.0
      %771 = vmatpush.xpose.msra.mxu0 0.0
      %772 = vmatpush.xpose.msra.mxu0 0.0
      %773 = vmatpush.xpose.msra.mxu0 0.0
      %774 = vmatpush.xpose.msra.mxu0 0.0
      %775 = vmatpush.xpose.msra.mxu0 0.0
      %776 = vmatpush.xpose.msra.mxu0 0.0
      %777 = vmatpush.xpose.msra.mxu0 0.0
      %778 = vmatpush.xpose.msra.mxu0 0.0
      %779 = vmatpush.xpose.msra.mxu0 0.0
      %780 = vmatpush.xpose.msra.mxu0 0.0
      %781 = vmatpush.xpose.msra.mxu0 0.0
      %782 = vmatpush.xpose.msra.mxu0 %v765
      %783 = vmatmul.f32.gmra.mxu0 %v763
      %v784 = vpop.f32.mrf.mxu0
      %v785 = vadd.f32 0.0, %v784
      %786 = vdwg.mxu0
      %v787 = vmul.f32 %v785, 0.25
      %v788 = vadd.f32 %v787, %v719
      %v789 = vsel %vm721, %v788, -inf
      %790 = vmax.xlane.f32.xlu0 %v789
      %v791 = vpop.xlane.xlu0 %790
      %v792 = vsub.f32 %v788, %v791
      %v793 = vmul.f32 %v792, 1.442695
      %v794 = vpow.pop %v793
      %v795 = vsel %vm721, %v794, 0.0
      %796 = vadd.xlane.f32.xlu0 %v795
      %v797 = vpop.xlane.xlu0 %796
      %v798 = vrcp.pop %v797
      %v799 = vmul.f32 %v794, %v798
      %800 = vrot.lane.b32.xlu0 %v684, 48
      %v801 = vpop.permute.xlu0 %800
      %v804 = vsel %vm721, %v799, 0
      %806 = vmatpush.msra.mxu0 0.0
      %807 = vmatpush.msra.mxu0 0.0
      %808 = vmatpush.msra.mxu0 0.0
      %809 = vmatpush.msra.mxu0 0.0
      %810 = vmatpush.msra.mxu0 0.0
      %811 = vmatpush.msra.mxu0 0.0
      %812 = vmatpush.msra.mxu0 0.0
      %813 = vmatpush.msra.mxu0 0.0
      %814 = vmatpush.msra.mxu0 0.0
      %815 = vmatpush.msra.mxu0 0.0
      %816 = vmatpush.msra.mxu0 0.0
      %817 = vmatpush.msra.mxu0 0.0
      %818 = vmatpush.msra.mxu0 0.0
      %819 = vmatpush.msra.mxu0 0.0
      %820 = vmatpush.msra.mxu0 0.0
      %821 = vmatpush.msra.mxu0 %v801
      %822 = vmatmul.f32.gmra.mxu0 %v804
      %v823 = vpop.f32.mrf.mxu0
      %v824 = vadd.f32 0.0, %v823
      %825 = vdwg.mxu0
      %827 = vrot.lane.b32.xlu0 %v824, 16
      %v828 = vpop.permute.xlu0 %827
      %v830 = vsel %vm693, %v757, %v828
      %832 = vrot.lane.b32.xlu0 %v687, 96
      %v833 = vpop.permute.xlu0 %832
      %v834 = vsel %vm693, %v687, 0
      %v836 = vsel %vm693, %v833, 0
      %838 = vmatpush.xpose.msra.mxu0 0.0
      %839 = vmatpush.xpose.msra.mxu0 0.0
      %840 = vmatpush.xpose.msra.mxu0 0.0
      %841 = vmatpush.xpose.msra.mxu0 0.0
      %842 = vmatpush.xpose.msra.mxu0 0.0
      %843 = vmatpush.xpose.msra.mxu0 0.0
      %844 = vmatpush.xpose.msra.mxu0 0.0
      %845 = vmatpush.xpose.msra.mxu0 0.0
      %846 = vmatpush.xpose.msra.mxu0 0.0
      %847 = vmatpush.xpose.msra.mxu0 0.0
      %848 = vmatpush.xpose.msra.mxu0 0.0
      %849 = vmatpush.xpose.msra.mxu0 0.0
      %850 = vmatpush.xpose.msra.mxu0 0.0
      %851 = vmatpush.xpose.msra.mxu0 0.0
      %852 = vmatpush.xpose.msra.mxu0 0.0
      %853 = vmatpush.xpose.msra.mxu0 %v836
      %854 = vmatmul.f32.gmra.mxu0 %v834
      %v855 = vpop.f32.mrf.mxu0
      %v856 = vadd.f32 0.0, %v855
      %857 = vdwg.mxu0
      %v858 = vmul.f32 %v856, 0.25
      %v859 = vperm.slane %v689, 1
      %v860 = vadd.f32 %v858, %v859
      %v861 = vsel %vm721, %v860, -inf
      %862 = vmax.xlane.f32.xlu0 %v861
      %v863 = vpop.xlane.xlu0 %862
      %v864 = vsub.f32 %v860, %v863
      %v865 = vmul.f32 %v864, 1.442695
      %v866 = vpow.pop %v865
      %v867 = vsel %vm721, %v866, 0.0
      %868 = vadd.xlane.f32.xlu0 %v867
      %v869 = vpop.xlane.xlu0 %868
      %v870 = vrcp.pop %v869
      %v871 = vmul.f32 %v866, %v870
      %872 = vrot.lane.b32.xlu0 %v687, 64
      %v873 = vpop.permute.xlu0 %872
      %v876 = vsel %vm721, %v871, 0
      %878 = vmatpush.msra.mxu0 0.0
      %879 = vmatpush.msra.mxu0 0.0
      %880 = vmatpush.msra.mxu0 0.0
      %881 = vmatpush.msra.mxu0 0.0
      %882 = vmatpush.msra.mxu0 0.0
      %883 = vmatpush.msra.mxu0 0.0
      %884 = vmatpush.msra.mxu0 0.0
      %885 = vmatpush.msra.mxu0 0.0
      %886 = vmatpush.msra.mxu0 0.0
      %887 = vmatpush.msra.mxu0 0.0
      %888 = vmatpush.msra.mxu0 0.0
      %889 = vmatpush.msra.mxu0 0.0
      %890 = vmatpush.msra.mxu0 0.0
      %891 = vmatpush.msra.mxu0 0.0
      %892 = vmatpush.msra.mxu0 0.0
      %893 = vmatpush.msra.mxu0 %v873
      %894 = vmatmul.f32.gmra.mxu0 %v876
      %v895 = vpop.f32.mrf.mxu0
      %v896 = vadd.f32 0.0, %v895
      %897 = vdwg.mxu0
      %898 = vrot.lane.b32.xlu0 %v687, 112
      %v899 = vpop.permute.xlu0 %898
      %900 = vrot.lane.b32.xlu0 %v687, 80
      %v901 = vpop.permute.xlu0 %900
      %v902 = vsel %vm693, %v899, 0
      %v904 = vsel %vm693, %v901, 0
      %906 = vmatpush.xpose.msra.mxu0 0.0
      %907 = vmatpush.xpose.msra.mxu0 0.0
      %908 = vmatpush.xpose.msra.mxu0 0.0
      %909 = vmatpush.xpose.msra.mxu0 0.0
      %910 = vmatpush.xpose.msra.mxu0 0.0
      %911 = vmatpush.xpose.msra.mxu0 0.0
      %912 = vmatpush.xpose.msra.mxu0 0.0
      %913 = vmatpush.xpose.msra.mxu0 0.0
      %914 = vmatpush.xpose.msra.mxu0 0.0
      %915 = vmatpush.xpose.msra.mxu0 0.0
      %916 = vmatpush.xpose.msra.mxu0 0.0
      %917 = vmatpush.xpose.msra.mxu0 0.0
      %918 = vmatpush.xpose.msra.mxu0 0.0
      %919 = vmatpush.xpose.msra.mxu0 0.0
      %920 = vmatpush.xpose.msra.mxu0 0.0
      %921 = vmatpush.xpose.msra.mxu0 %v904
      %922 = vmatmul.f32.gmra.mxu0 %v902
      %v923 = vpop.f32.mrf.mxu0
      %v924 = vadd.f32 0.0, %v923
      %925 = vdwg.mxu0
      %v926 = vmul.f32 %v924, 0.25
      %v927 = vadd.f32 %v926, %v859
      %v928 = vsel %vm721, %v927, -inf
      %929 = vmax.xlane.f32.xlu0 %v928
      %v930 = vpop.xlane.xlu0 %929
      %v931 = vsub.f32 %v927, %v930
      %v932 = vmul.f32 %v931, 1.442695
      %v933 = vpow.pop %v932
      %v934 = vsel %vm721, %v933, 0.0
      %935 = vadd.xlane.f32.xlu0 %v934
      %v936 = vpop.xlane.xlu0 %935
      %v937 = vrcp.pop %v936
      %v938 = vmul.f32 %v933, %v937
      %939 = vrot.lane.b32.xlu0 %v687, 48
      %v940 = vpop.permute.xlu0 %939
      %v943 = vsel %vm721, %v938, 0
      %945 = vmatpush.msra.mxu0 0.0
      %946 = vmatpush.msra.mxu0 0.0
      %947 = vmatpush.msra.mxu0 0.0
      %948 = vmatpush.msra.mxu0 0.0
      %949 = vmatpush.msra.mxu0 0.0
      %950 = vmatpush.msra.mxu0 0.0
      %951 = vmatpush.msra.mxu0 0.0
      %952 = vmatpush.msra.mxu0 0.0
      %953 = vmatpush.msra.mxu0 0.0
      %954 = vmatpush.msra.mxu0 0.0
      %955 = vmatpush.msra.mxu0 0.0
      %956 = vmatpush.msra.mxu0 0.0
      %957 = vmatpush.msra.mxu0 0.0
      %958 = vmatpush.msra.mxu0 0.0
      %959 = vmatpush.msra.mxu0 0.0
      %960 = vmatpush.msra.mxu0 %v940
      %961 = vmatmul.f32.gmra.mxu0 %v943
      %v962 = vpop.f32.mrf.mxu0
      %v963 = vadd.f32 0.0, %v962
      %964 = vdwg.mxu0
      %966 = vrot.lane.b32.xlu0 %v963, 16
      %v967 = vpop.permute.xlu0 %966
      %v969 = vsel %vm693, %v896, %v967
      %v970 = vld [vmem:[%s603] sm:$0xff]
      %v971 = vld [vmem:[%s603 + $0x8] sm:$0xff]
      %v972 = vld [vmem:[%s603 + $0x10] sm:$0xff]
      %v973 = vld [vmem:[%s603 + $0x18] sm:$0xff]
      %v974 = vld [vmem:[%s606] sm:$0x1]
      %v976 = vperm.slane %v974, 0
      %v979 = vsel %vm659, %v830, 0
      %v982 = vsel %vm659, %v969, 0
      %984 = vmatpush.msra.mxu0 0.0
      %985 = vmatpush.msra.mxu0 0.0
      %986 = vmatpush.msra.mxu0 0.0
      %987 = vmatpush.msra.mxu0 0.0
      %988 = vmatpush.msra.mxu0 0.0
      %989 = vmatpush.msra.mxu0 0.0
      %990 = vmatpush.msra.mxu0 0.0
      %991 = vmatpush.msra.mxu0 0.0
      %992 = vmatpush.msra.mxu0 0.0
      %993 = vmatpush.msra.mxu0 0.0
      %994 = vmatpush.msra.mxu0 0.0
      %995 = vmatpush.msra.mxu0 0.0
      %996 = vmatpush.msra.mxu0 %v973
      %997 = vmatpush.msra.mxu0 %v972
      %998 = vmatpush.msra.mxu0 %v971
      %999 = vmatpush.msra.mxu0 %v970
      %1000 = vmatmul.f32.gmra.mxu0 %v979
      %v1001 = vpop.f32.mrf.mxu0
      %v1002 = vadd.f32 %v976, %v1001
      %1003 = vmatmul.f32.gmra.mxu0 %v982
      %v1004 = vpop.f32.mrf.mxu0
      %v1005 = vadd.f32 %v976, %v1004
      %1006 = vdwg.mxu0
      %v1007 = vadd.f32 %v1002, %v649
      %v1008 = vadd.f32 %v1005, %v650
      %v1009 = vld [vmem:[%s609] sm:$0x1]
      %v1010 = vld [vmem:[%s612] sm:$0x1]
      %v1011 = vsel %vm659, %v1007, 0.0
      %1012 = vadd.xlane.f32.xlu0 %v1011
      %v1013 = vpop.xlane.xlu0 %1012
      %v1014 = vsel %vm659, %v1008, 0.0
      %1015 = vadd.xlane.f32.xlu0 %v1014
      %v1016 = vpop.xlane.xlu0 %1015
      %v1017 = vrcp.pop 32.0
      %v1018 = vmul.f32 32.0, %v1017
      %v1019 = vsub.f32 1.0, %v1018
      %v1020 = vmul.f32 %v1017, %v1019
      %v1021 = vadd.f32 %v1017, %v1020
      %vm1022 = vweird.f32 %v1017
      %v1023 = vsel %vm1022, %v1017, %v1021
      %v1024 = vmul.f32 %v1013, %v1023
      %v1025 = vmul.f32 %v1016, %v1023
      %v1026 = vsub.f32 %v1007, %v1024
      %v1027 = vsub.f32 %v1008, %v1025
      %v1028 = vmul.f32 %v1026, %v1026
      %v1029 = vmul.f32 %v1027, %v1027
      %v1030 = vsel %vm659, %v1028, 0.0
      %1031 = vadd.xlane.f32.xlu0 %v1030
      %v1032 = vpop.xlane.xlu0 %1031
      %v1033 = vsel %vm659, %v1029, 0.0
      %1034 = vadd.xlane.f32.xlu0 %v1033
      %v1035 = vpop.xlane.xlu0 %1034
      %v1036 = vmul.f32 %v1032, %v1023
      %v1037 = vmul.f32 %v1035, %v1023
      %v1038 = vadd.f32 %v1036, 1e-12
      %v1039 = vadd.f32 %v1037, 1e-12
      %v1040 = vrsqrt.pop %v1038
      %v1041 = vmul.f32 %v1040, %v1038
      %v1042 = vmul.f32 %v1041, %v1040
      %v1043 = vmul.f32 0.5, %v1042
      %v1044 = vsub.f32 1.5, %v1043
      %v1045 = vmul.f32 %v1040, %v1044
      %vm1046 = vweird.f32 %v1038
      %vm1047 = vweird.f32 %v1040
      %vm1048 = vmor %vm1046, %vm1047
      %v1049 = vsel %vm1048, %v1040, %v1045
      %v1050 = vrsqrt.pop %v1039
      %v1051 = vmul.f32 %v1050, %v1039
      %v1052 = vmul.f32 %v1051, %v1050
      %v1053 = vmul.f32 0.5, %v1052
      %v1054 = vsub.f32 1.5, %v1053
      %v1055 = vmul.f32 %v1050, %v1054
      %vm1056 = vweird.f32 %v1039
      %vm1057 = vweird.f32 %v1050
      %vm1058 = vmor %vm1056, %vm1057
      %v1059 = vsel %vm1058, %v1050, %v1055
      %v1060 = vmul.f32 %v1026, %v1049
      %v1061 = vmul.f32 %v1027, %v1059
      %v1063 = vperm.slane %v1009, 0
      %v1065 = vmul.f32 %v1060, %v1063
      %v1066 = vmul.f32 %v1061, %v1063
      %v1068 = vperm.slane %v1010, 0
      %v1070 = vadd.f32 %v1065, %v1068
      %v1071 = vadd.f32 %v1066, %v1068
      %v1072 = vld [vmem:[%s617] sm:$0xff]
      %v1073 = vld [vmem:[%s617 + $0x8] sm:$0xff]
      %v1074 = vld [vmem:[%s617 + $0x10] sm:$0xff]
      %v1075 = vld [vmem:[%s617 + $0x18] sm:$0xff]
      %v1076 = vld [vmem:[%s620] sm:$0x1]
      %v1078 = vperm.slane %v1076, 0
      %v1081 = vsel %vm659, %v1070, 0
      %v1084 = vsel %vm659, %v1071, 0
      %1086 = vmatpush.msra.mxu0 0.0
      %1087 = vmatpush.msra.mxu0 0.0
      %1088 = vmatpush.msra.mxu0 0.0
      %1089 = vmatpush.msra.mxu0 0.0
      %1090 = vmatpush.msra.mxu0 0.0
      %1091 = vmatpush.msra.mxu0 0.0
      %1092 = vmatpush.msra.mxu0 0.0
      %1093 = vmatpush.msra.mxu0 0.0
      %1094 = vmatpush.msra.mxu0 0.0
      %1095 = vmatpush.msra.mxu0 0.0
      %1096 = vmatpush.msra.mxu0 0.0
      %1097 = vmatpush.msra.mxu0 0.0
      %1098 = vmatpush.msra.mxu0 %v1075
      %1099 = vmatpush.msra.mxu0 %v1074
      %1100 = vmatpush.msra.mxu0 %v1073
      %1101 = vmatpush.msra.mxu0 %v1072
      %1102 = vmatmul.f32.gmra.mxu0 %v1081
      %v1103 = vpop.f32.mrf.mxu0
      %v1104 = vadd.f32 %v1078, %v1103
      %1105 = vmatmul.f32.gmra.mxu0 %v1084
      %v1106 = vpop.f32.mrf.mxu0
      %v1107 = vadd.f32 %v1078, %v1106
      %1108 = vdwg.mxu0
      %v1109 = vmul.f32 %v1104, %v1104
      %v1110 = vmul.f32 %v1107, %v1107
      %v1111 = vmul.f32 %v1104, %v1109
      %v1112 = vmul.f32 %v1107, %v1110
      %v1113 = vmul.f32 %v1111, 0.044715
      %v1114 = vmul.f32 %v1112, 0.044715
      %v1115 = vadd.f32 %v1104, %v1113
      %v1116 = vadd.f32 %v1107, %v1114
      %v1117 = vmul.f32 %v1115, 0.7978846
      %v1118 = vmul.f32 %v1116, 0.7978846
      %v1119 = vtanh.pop %v1117
      %v1120 = vtanh.pop %v1118
      %v1121 = vadd.f32 %v1119, 1.0
      %v1122 = vadd.f32 %v1120, 1.0
      %v1123 = vmul.f32 %v1121, 0.5
      %v1124 = vmul.f32 %v1122, 0.5
      %v1125 = vmul.f32 %v1104, %v1123
      %v1126 = vmul.f32 %v1107, %v1124
      %v1127 = vld [vmem:[%s625] sm:$0xff]
      %v1128 = vld [vmem:[%s625 + $0x8] sm:$0xff]
      %v1129 = vld [vmem:[%s625 + $0x10] sm:$0xff]
      %v1130 = vld [vmem:[%s625 + $0x18] sm:$0xff]
      %v1131 = vld [vmem:[%s625 + $0x20] sm:$0xff]
      %v1132 = vld [vmem:[%s625 + $0x28] sm:$0xff]
      %v1133 = vld [vmem:[%s625 + $0x30] sm:$0xff]
      %v1134 = vld [vmem:[%s625 + $0x38] sm:$0xff]
      %v1135 = vld [vmem:[%s628] sm:$0x1]
      %v1137 = vperm.slane %v1135, 0
      %vm1139 = vcmask 523264
      %v1141 = vsel %vm1139, %v1125, 0
      %v1144 = vsel %vm1139, %v1126, 0
      %1146 = vmatpush.msra.mxu0 0.0
      %1147 = vmatpush.msra.mxu0 0.0
      %1148 = vmatpush.msra.mxu0 0.0
      %1149 = vmatpush.msra.mxu0 0.0
      %1150 = vmatpush.msra.mxu0 0.0
      %1151 = vmatpush.msra.mxu0 0.0
      %1152 = vmatpush.msra.mxu0 0.0
      %1153 = vmatpush.msra.mxu0 0.0
      %1154 = vmatpush.msra.mxu0 %v1134
      %1155 = vmatpush.msra.mxu0 %v1133
      %1156 = vmatpush.msra.mxu0 %v1132
      %1157 = vmatpush.msra.mxu0 %v1131
      %1158 = vmatpush.msra.mxu0 %v1130
      %1159 = vmatpush.msra.mxu0 %v1129
      %1160 = vmatpush.msra.mxu0 %v1128
      %1161 = vmatpush.msra.mxu0 %v1127
      %1162 = vmatmul.f32.gmra.mxu0 %v1141
      %v1163 = vpop.f32.mrf.mxu0
      %v1164 = vadd.f32 %v1137, %v1163
      %1165 = vmatmul.f32.gmra.mxu0 %v1144
      %v1166 = vpop.f32.mrf.mxu0
      %v1167 = vadd.f32 %v1137, %v1166
      %1168 = vdwg.mxu0
      %v1169 = vadd.f32 %v1164, %v1070
      %v1170 = vadd.f32 %v1167, %v1071
      %v1171 = vld [vmem:[%s631] sm:$0x1]
      %v1172 = vld [vmem:[%s634] sm:$0x1]
      %v1173 = vsel %vm659, %v1169, 0.0
      %1174 = vadd.xlane.f32.xlu0 %v1173
      %v1175 = vpop.xlane.xlu0 %1174
      %v1176 = vsel %vm659, %v1170, 0.0
      %1177 = vadd.xlane.f32.xlu0 %v1176
      %v1178 = vpop.xlane.xlu0 %1177
      %v1179 = vmul.f32 %v1175, %v1023
      %v1180 = vmul.f32 %v1178, %v1023
      %v1181 = vsub.f32 %v1169, %v1179
      %v1182 = vsub.f32 %v1170, %v1180
      %v1183 = vmul.f32 %v1181, %v1181
      %v1184 = vmul.f32 %v1182, %v1182
      %v1185 = vsel %vm659, %v1183, 0.0
      %1186 = vadd.xlane.f32.xlu0 %v1185
      %v1187 = vpop.xlane.xlu0 %1186
      %v1188 = vsel %vm659, %v1184, 0.0
      %1189 = vadd.xlane.f32.xlu0 %v1188
      %v1190 = vpop.xlane.xlu0 %1189
      %v1191 = vmul.f32 %v1187, %v1023
      %v1192 = vmul.f32 %v1190, %v1023
      %v1193 = vadd.f32 %v1191, 1e-12
      %v1194 = vadd.f32 %v1192, 1e-12
      %v1195 = vrsqrt.pop %v1193
      %v1196 = vmul.f32 %v1195, %v1193
      %v1197 = vmul.f32 %v1196, %v1195
      %v1198 = vmul.f32 0.5, %v1197
      %v1199 = vsub.f32 1.5, %v1198
      %v1200 = vmul.f32 %v1195, %v1199
      %vm1201 = vweird.f32 %v1193
      %vm1202 = vweird.f32 %v1195
      %vm1203 = vmor %vm1201, %vm1202
      %v1204 = vsel %vm1203, %v1195, %v1200
      %v1205 = vrsqrt.pop %v1194
      %v1206 = vmul.f32 %v1205, %v1194
      %v1207 = vmul.f32 %v1206, %v1205
      %v1208 = vmul.f32 0.5, %v1207
      %v1209 = vsub.f32 1.5, %v1208
      %v1210 = vmul.f32 %v1205, %v1209
      %vm1211 = vweird.f32 %v1194
      %vm1212 = vweird.f32 %v1205
      %vm1213 = vmor %vm1211, %vm1212
      %v1214 = vsel %vm1213, %v1205, %v1210
      %v1215 = vmul.f32 %v1181, %v1204
      %v1216 = vmul.f32 %v1182, %v1214
      %v1218 = vperm.slane %v1171, 0
      %v1220 = vmul.f32 %v1215, %v1218
      %v1221 = vmul.f32 %v1216, %v1218
      %v1223 = vperm.slane %v1172, 0
      %v1225 = vadd.f32 %v1220, %v1223
      %v1226 = vadd.f32 %v1221, %v1223
      %1227 = vst.msk [vmem:[#allocation2] sm:$0xff] %vm659, %v1225
      %1228 = vst.msk [vmem:[#allocation2 + $0x8] sm:$0xff] %vm659, %v1226
      %1229 = vst.msk [vmem:[%s639] sm:$0xff] %vm659, %v1225
      %1230 = vst.msk [vmem:[%s639 + $0x8] sm:$0xff] %vm659, %v1226
      %p1231 = scmp.lt.s32.totalorder %s25, 1
      %s1232 = scalar_select %p1231, %s25, 1
      %s1233 = smul.addr %s1232, 2
      %s1234 = smul.addr %s1233, 8
      %s1235 = scalar_lea.vmem %s14, %s1234
      // Predicated region
      $region81: #{bert_forward.4} parent=75 // pred_check
        %p1236 = pneg %p397
      $region82: #{bert_forward.4} parent=75 // pred_check_branch
        %1238 = sbr.rel (%p1236) target = $region84
      $region83: #{bert_forward.4} parent=75 // pred_region
        _
      $region84: #{bert_forward.4} parent=75 // pred_fallthru
        _
    $region76: #{bert_forward.4} parent=5 // pred_fallthru
      _
    %p1239 = scmp.le.s32.totalorder 2, %s20
    // Predicated region
    $region85: #{bert_forward.4} parent=5 // pred_check
      %p1240 = pneg %p1239
    $region86: #{bert_forward.4} parent=5 // pred_check_branch
      %1242 = sbr.rel (%p1240) target = $region88
    $region87: #{bert_forward.4} parent=5 // pred_region
      %s1243 = ssub.s32 %s20, 2
      // Predicated region
      $region89: #{bert_forward.4} parent=87 // pred_check
        %p1244 = pneg %p403
      $region90: #{bert_forward.4} parent=87 // pred_check_branch
        %1246 = sbr.rel (%p1244) target = $region92
      $region91: #{bert_forward.4} parent=87 // pred_region
        %p1247 = scmp.lt.s32.totalorder %s26, 1
        %s1248 = scalar_select %p1247, %s26, 1
        %s1249 = smul.addr %s1248, 2
        %s1250 = smul.addr %s1249, 8
        %s1251 = scalar_lea.vmem %s14, %s1250
      $region92: #{bert_forward.4} parent=87 // pred_fallthru
        _
    $region88: #{bert_forward.4} parent=5 // pred_fallthru
      _
  $region6: #{bert_forward.4} parent=0 // loop_footer
    %s24 = sadd.s32 1, %s20
  $region7: #{bert_forward.4} parent=0 // loop_footer_branch
    %19 = sbr.rel target = $region3
  $region8: #{bert_forward.4} parent=0 // loop_exit
    _

</llo_original>
